<compile_context>
chip_gen: v6e
topology: v6e:2x2x1
jax: 0.10.0
libtpu: 0.0.40
codegen_flags: <defaults>
</compile_context>

<pallas_src>
import functools
import math

import numpy as np
import jax
import jax.numpy as jnp
from jax import lax
from jax.experimental import pallas as pl
from jax.experimental.pallas import tpu as pltpu


def _round_up(a: int, b: int) -> int:
    return -(-a // b) * b


# ----------------------------------------------------------------------------
# Constant-matrix construction (mirrors torchaudio.functional helpers).
# ----------------------------------------------------------------------------
def _hann_window(win_length: int, n_fft: int) -> np.ndarray:
    # torch.hann_window(periodic=True)
    n = np.arange(win_length)
    w = 0.5 - 0.5 * np.cos(2.0 * math.pi * n / win_length)
    if win_length < n_fft:
        left = (n_fft - win_length) // 2
        w = np.pad(w, (left, n_fft - win_length - left))
    elif win_length > n_fft:
        raise ValueError("win_length cannot exceed n_fft")
    return w.astype(np.float32)  # (n_fft,)


def _linear_fbanks(n_freqs, f_min, f_max, n_filter, sample_rate) -> np.ndarray:
    # torchaudio.functional.linear_fbanks
    all_freqs = np.linspace(0, sample_rate // 2, n_freqs)
    f_pts = np.linspace(f_min, f_max, n_filter + 2)
    f_diff = f_pts[1:] - f_pts[:-1]
    slopes = f_pts[None, :] - all_freqs[:, None]
    down = (-1.0 * slopes[:, :-2]) / f_diff[:-1]
    up = slopes[:, 2:] / f_diff[1:]
    fb = np.maximum(0.0, np.minimum(down, up))
    return fb.astype(np.float32)  # (n_freqs, n_filter)


def _create_dct(n_lfcc, n_filter, norm) -> np.ndarray:
    # torchaudio.functional.create_dct (returned here as (n_lfcc, n_filter))
    n = np.arange(float(n_filter))
    k = np.arange(float(n_lfcc))[:, None]
    dct = np.cos(math.pi / float(n_filter) * (n + 0.5) * k)  # (n_lfcc, n_filter)
    if norm is None:
        dct *= 2.0
    else:
        if norm != "ortho":
            raise ValueError("norm must be 'ortho' or None")
        dct[0] *= 1.0 / math.sqrt(2.0)
        dct *= math.sqrt(2.0 / float(n_filter))
    return dct.astype(np.float32)


def _dft_cossin_matrix(window, n_fft, n_freqs_padded, scale) -> np.ndarray:
    # Windowed real-DFT bases, stacked [cos; sin] along rows so the kernel does
    # ONE matmul:  cs @ frames -> [re; im]  (frequency on sublanes, time on lanes).
    n_freqs = n_fft // 2 + 1
    k = np.arange(n_freqs)[:, None].astype(np.float64)
    n = np.arange(n_fft)[None, :].astype(np.float64)
    ang = 2.0 * math.pi * k * n / n_fft
    w = window[None, :].astype(np.float64) * scale
    cos = np.cos(ang) * w
    sin = np.sin(ang) * w
    pad = n_freqs_padded - n_freqs
    if pad:
        cos = np.pad(cos, ((0, pad), (0, 0)))
        sin = np.pad(sin, ((0, pad), (0, 0)))
    return np.concatenate([cos, sin], axis=0).astype(np.float32)  # (2*NFp, n_fft)


# ----------------------------------------------------------------------------
# Tiling / VMEM helpers.
# ----------------------------------------------------------------------------
def _choose_frame_tile(n_frames, frame_tile, n_rows):
    """Pick a lane-aligned (multiple of 128) time tile and the tile count."""
    tf_cap = max(128, (int(frame_tile) // 128) * 128)
    tf = min(tf_cap, _round_up(n_frames, 128))
    num_tiles = -(-n_frames // tf)
    # Keep at least 2 grid steps when the workload allows it (v7x has 2 TCs).
    if n_rows * num_tiles < 2 and n_frames > 128:
        num_tiles = 2
    tf = _round_up(-(-n_frames // num_tiles), 128)
    return tf, num_tiles, tf * num_tiles


def _k1_vmem_bytes(tf, n_fft, nfp, n_filter):
    nf2 = 2 * nfp
    blocks = 2 * (4 * n_fft * tf + 4 * n_filter * tf + 4 * 8 * 128)   # dbl-buffered in/out
    consts = 2 * (2 * nf2 * n_fft * 2 + 2 * n_filter * nfp)           # bf16 cs_hi+cs_lo, bf16 fb
    inter = (2 * 4 * nf2 * tf          # two live f32 (2*NFp, tf) partials
             + 2 * 2 * n_fft * tf      # f_hi, f_lo (bf16)
             + 4 * nfp * tf            # power spectrum
             + 2 * 4 * n_filter * tf)  # filt + dB
    total = blocks + consts + inter
    return int(min(max(total + total // 4 + (2 << 20), 8 << 20), 64 << 20))


def _k2_vmem_bytes(tf, n_filter, n_lfcc):
    blocks = 2 * (4 * n_filter * tf + 4 * n_lfcc * tf)
    consts = 2 * 4 * n_lfcc * n_filter
    inter = 4 * n_filter * tf
    total = blocks + consts + inter
    return int(min(max(total + total // 4 + (2 << 20), 4 << 20), 64 << 20))


# ----------------------------------------------------------------------------
# Pallas kernels.
# ----------------------------------------------------------------------------
def _spec_fbank_db_kernel(frames_ref, cs_hi_ref, cs_lo_ref, fb_ref, o_ref, mx_ref,
                          *, nfp, power, log_lf, db_offset, amin):
    """Windowed DFT power spectrum + linear filterbank + dB/log, time-last."""
    f = frames_ref[...]                                   # (n_fft, tf) f32
    # bf16 hi/lo split: 3 single-pass bf16 matmuls give ~f32 accuracy at half
    # the MXU passes of precision=HIGHEST.
    f_hi = f.astype(jnp.bfloat16)
    f_lo = (f - f_hi.astype(jnp.float32)).astype(jnp.bfloat16)
    cs_hi = cs_hi_ref[...]
    cs = (jnp.dot(cs_hi, f_hi, preferred_element_type=jnp.float32)
          + jnp.dot(cs_hi, f_lo, preferred_element_type=jnp.float32)
          + jnp.dot(cs_lo_ref[...], f_hi, preferred_element_type=jnp.float32))
    re = cs[:nfp, :]                                      # (NFp, tf)
    im = cs[nfp:, :]
    s = re * re + im * im                                 # |STFT|^2 (scaled)
    if power == 2.0:
        spec = s
    elif power == 1.0:
        spec = jnp.sqrt(s)
    else:
        spec = s ** (power / 2.0)
    filt = jnp.dot(fb_ref[...], spec.astype(jnp.bfloat16),
                   preferred_element_type=jnp.float32)    # (n_filter, tf)
    if log_lf:
        db = jnp.log(filt + 1e-6)
    else:
        scale = 10.0 / math.log(10.0)                     # 10*log10(x) = scale*ln(x)
        db = scale * jnp.log(jnp.maximum(filt, amin)) - db_offset
    o_ref[...] = db
    # Per-tile max for the top_db clamp (zero-padded frames sit exactly at the
    # amin floor, so including them never changes the max).
    m = jnp.max(jnp.max(db, axis=1, keepdims=True), axis=0, keepdims=True)  # (1,1)
    mx_ref[...] = jnp.broadcast_to(m, (8, 128))


def _dct_clamp_kernel(x_ref, dct_ref, thr_ref, o_ref):
    """top_db clamp fused with DCT-II; output already (n_lfcc, time)."""
    thr = thr_ref[pl.program_id(0)]                       # scalar from SMEM
    x = jnp.maximum(x_ref[...], thr)                      # (n_filter, tf)
    o_ref[...] = jnp.dot(dct_ref[...], x,                 # (n_lfcc, tf)
                         preferred_element_type=jnp.float32,
                         precision=lax.Precision.HIGHEST)


# ----------------------------------------------------------------------------
# pallas_call wrappers.
# ----------------------------------------------------------------------------
def _spec_fbank_db(frames, cs_hi, cs_lo, fb_t, *, frame_tile, nfp, power,
                   log_lf, db_offset, amin):
    R, n_fft, t_pad = frames.shape
    n_filter = fb_t.shape[0]
    tf = frame_tile
    n_t = t_pad // tf
    kernel = functools.partial(_spec_fbank_db_kernel, nfp=nfp, power=power,
                               log_lf=log_lf, db_offset=db_offset, amin=amin)
    return pl.pallas_call(
        kernel,
        out_shape=(jax.ShapeDtypeStruct((R, n_filter, t_pad), jnp.float32),
                   jax.ShapeDtypeStruct((R, n_t, 8, 128), jnp.float32)),
        grid=(R, n_t),
        in_specs=[
            pl.BlockSpec((None, n_fft, tf), lambda r, t: (r, 0, t)),
            pl.BlockSpec((2 * nfp, n_fft), lambda r, t: (0, 0)),
            pl.BlockSpec((2 * nfp, n_fft), lambda r, t: (0, 0)),
            pl.BlockSpec((n_filter, nfp), lambda r, t: (0, 0)),
        ],
        out_specs=(
            pl.BlockSpec((None, n_filter, tf), lambda r, t: (r, 0, t)),
            pl.BlockSpec((None, None, 8, 128), lambda r, t: (r, t, 0, 0)),
        ),
        compiler_params=pltpu.CompilerParams(
            dimension_semantics=("parallel", "parallel"),
            vmem_limit_bytes=_k1_vmem_bytes(tf, n_fft, nfp, n_filter)),
    )(frames, cs_hi, cs_lo, fb_t)


def _dct_clamp(specgram, dct_t, thr, *, frame_tile):
    R, n_filter, t_pad = specgram.shape
    n_lfcc = dct_t.shape[0]
    tf = frame_tile
    n_t = t_pad // tf
    return pl.pallas_call(
        _dct_clamp_kernel,
        out_shape=jax.ShapeDtypeStruct((R, n_lfcc, t_pad), jnp.float32),
        grid=(R, n_t),
        in_specs=[
            pl.BlockSpec((None, n_filter, tf), lambda r, t: (r, 0, t)),
            pl.BlockSpec((n_lfcc, n_filter), lambda r, t: (0, 0)),
            pl.BlockSpec(memory_space=pltpu.MemorySpace.SMEM),
        ],
        out_specs=pl.BlockSpec((None, n_lfcc, tf), lambda r, t: (r, 0, t)),
        compiler_params=pltpu.CompilerParams(
            dimension_semantics=("parallel", "parallel"),
            vmem_limit_bytes=_k2_vmem_bytes(tf, n_filter, n_lfcc)),
    )(specgram, dct_t, thr)


# ----------------------------------------------------------------------------
# LFCC module (forward only).
# ----------------------------------------------------------------------------
class LFCC:
    """JAX/Pallas equivalent of torchaudio.transforms.LFCC (forward pass)."""

    def __init__(self, sample_rate=16000, n_filter=128, f_min=0.0, f_max=None,
                 n_lfcc=40, dct_type=2, norm="ortho", log_lf=False,
                 speckwargs=None, frame_tile=1024):
        if dct_type != 2:
            raise ValueError("DCT type not supported: {}".format(dct_type))
        self.sample_rate = sample_rate
        self.f_min = f_min
        self.f_max = f_max if f_max is not None else float(sample_rate // 2)
        self.n_filter = n_filter
        self.n_lfcc = n_lfcc
        self.norm = norm
        self.log_lf = log_lf
        self.top_db = 80.0
        self.amin = 1e-10
        self.db_multiplier = math.log10(max(self.amin, 1.0))
        self.frame_tile = int(frame_tile)

        speckwargs = dict(speckwargs or {})
        self.n_fft = speckwargs.get("n_fft", 400)
        self.win_length = speckwargs.get("win_length") or self.n_fft
        self.hop_length = speckwargs.get("hop_length") or self.win_length // 2
        self.pad = speckwargs.get("pad", 0)
        self.power = speckwargs.get("power", 2.0)
        self.normalized = speckwargs.get("normalized", False)
        self.center = speckwargs.get("center", True)
        self.pad_mode = speckwargs.get("pad_mode", "reflect")
        self.onesided = speckwargs.get("onesided", True)
        if self.power is None:
            # TODO(synk): power=None (complex spectrum output) has no Pallas path here.
            raise NotImplementedError("power=None (complex STFT) is not supported")
        if not self.onesided:
            raise NotImplementedError("onesided=False is not supported")
        if self.n_lfcc > self.n_fft:
            raise ValueError("Cannot select more LFCC coefficients than # fft bins")

        n_freqs = self.n_fft // 2 + 1
        self.n_freqs = n_freqs
        self.n_freqs_padded = _round_up(n_freqs, 128)

        window = _hann_window(self.win_length, self.n_fft)
        if self.normalized in (True, "window"):
            scale = 1.0 / math.sqrt(float(np.sum(window.astype(np.float64) ** 2)))
        elif self.normalized == "frame_length":
            scale = 1.0 / math.sqrt(float(self.win_length))
        else:
            scale = 1.0

        cossin = _dft_cossin_matrix(window, self.n_fft, self.n_freqs_padded, scale)
        cs = jnp.asarray(cossin)                              # (2*NFp, n_fft) f32
        cs_hi = cs.astype(jnp.bfloat16)
        cs_lo = (cs - cs_hi.astype(jnp.float32)).astype(jnp.bfloat16)
        self.cs_hi = cs_hi
        self.cs_lo = cs_lo

        fb = _linear_fbanks(n_freqs, self.f_min, self.f_max, n_filter, sample_rate)
        fb_t = np.zeros((n_filter, self.n_freqs_padded), np.float32)
        fb_t[:, :n_freqs] = fb.T
        self.filter_mat = jnp.asarray(fb)                     # (n_freqs, n_filter), reference
        self.fb_t = jnp.asarray(fb_t).astype(jnp.bfloat16)    # (n_filter, NFp), kernel

        dct = _create_dct(n_lfcc, n_filter, norm)             # (n_lfcc, n_filter)
        self.dct_mat = jnp.asarray(dct.T)                     # (n_filter, n_lfcc), reference
        self.dct_t = jnp.asarray(dct)                         # (n_lfcc, n_filter), kernel
        self.window = jnp.asarray(window)

    def __call__(self, waveform):
        x = jnp.asarray(waveform, jnp.float32)
        lead = x.shape[:-1]
        n = x.shape[-1]
        x2 = x.reshape(-1, n)
        R = x2.shape[0]

        if self.pad > 0:
            x2 = jnp.pad(x2, ((0, 0), (self.pad, self.pad)))
        if self.center:
            p = self.n_fft // 2
            x2 = jnp.pad(x2, ((0, 0), (p, p)), mode=self.pad_mode)
        length = x2.shape[-1]
        if length < self.n_fft:
            raise ValueError("waveform is shorter than n_fft")
        n_frames = 1 + (length - self.n_fft) // self.hop_length

        tf, n_t, t_pad = _choose_frame_tile(n_frames, self.frame_tile, R)

        # Time-last overlapping framing (time -> lanes everywhere downstream).
        # TODO(synk): framing could move inside kernel 1 (memory_space=pl.ANY +
        # manual DMA of a contiguous sample slab per tile) to drop this gather
        # and the (R, n_fft, T) HBM intermediate entirely.
        idx = (jnp.arange(self.n_fft, dtype=jnp.int32)[:, None]
               + jnp.arange(n_frames, dtype=jnp.int32)[None, :] * self.hop_length)
        frames = jnp.take(x2, idx, axis=1)                    # (R, n_fft, n_frames)
        if t_pad > n_frames:
            frames = jnp.pad(frames, ((0, 0), (0, 0), (0, t_pad - n_frames)))

        # Kernel 1: DFT power spectrum + filterbank + dB (or log) + tiny tile max.
        specgram, tile_max = _spec_fbank_db(
            frames, self.cs_hi, self.cs_lo, self.fb_t,
            frame_tile=tf, nfp=self.n_freqs_padded, power=float(self.power),
            log_lf=self.log_lf, db_offset=10.0 * self.db_multiplier, amin=self.amin)

        if self.log_lf:
            thr = jnp.full((R,), float(jnp.finfo(jnp.float32).min), jnp.float32)
        else:
            # top_db threshold per leading batch group (over channels x filter x
            # time), exactly like torchaudio.functional.amplitude_to_DB — but
            # reduced from the tiny per-tile max array, not the full spectrogram.
            groups = int(np.prod(lead[:-1], dtype=np.int64))
            gmax = jnp.max(tile_max.reshape(groups, -1), axis=1)
            thr = jnp.repeat(gmax - self.top_db, R // groups)

        # Kernel 2: clamp + DCT-II, output already (n_lfcc, time).
        lfcc = _dct_clamp(specgram, self.dct_t, thr, frame_tile=tf)
        lfcc = lfcc[:, :, :n_frames]
        return lfcc.reshape(lead + (self.n_lfcc, n_frames))   # (..., n_lfcc, time)


# ----------------------------------------------------------------------------
# Pure-JAX reference (rfft-based) for validation.
# ----------------------------------------------------------------------------
def _reference_lfcc(waveform, module: LFCC):
    x = jnp.asarray(waveform, jnp.float32)
    lead = x.shape[:-1]
    n = x.shape[-1]
    x2 = x.reshape(-1, n)
    R = x2.shape[0]
    if module.pad > 0:
        x2 = jnp.pad(x2, ((0, 0), (module.pad, module.pad)))
    if module.center:
        p = module.n_fft // 2
        x2 = jnp.pad(x2, ((0, 0), (p, p)), mode=module.pad_mode)
    length = x2.shape[-1]
    n_frames = 1 + (length - module.n_fft) // module.hop_length
    idx = (np.arange(n_frames)[:, None] * module.hop_length
           + np.arange(module.n_fft)[None, :])
    frames = x2[:, idx] * module.window[None, None, :]
    spec = jnp.fft.rfft(frames, n=module.n_fft, axis=-1)
    power = spec.real ** 2 + spec.imag ** 2
    if module.normalized in (True, "window"):
        power = power / jnp.sum(module.window ** 2)
    elif module.normalized == "frame_length":
        power = power / module.win_length
    if float(module.power) != 2.0:
        power = power ** (float(module.power) / 2.0)
    filt = jnp.matmul(power, module.filter_mat,
                      precision=lax.Precision.HIGHEST)        # (R, T, n_filter)
    if module.log_lf:
        db = jnp.log(filt + 1e-6)
    else:
        db = 10.0 * jnp.log10(jnp.maximum(filt, module.amin)) - 10.0 * module.db_multiplier
        groups = int(np.prod(lead[:-1], dtype=np.int64))
        gmax = jnp.max(db.reshape(groups, -1), axis=1)
        db = jnp.maximum(db, jnp.repeat(gmax - module.top_db, R // groups)[:, None, None])
    lfcc = jnp.matmul(db, module.dct_mat, precision=lax.Precision.HIGHEST)
    lfcc = lfcc.reshape(lead + (n_frames, module.n_lfcc))
    return jnp.swapaxes(lfcc, -1, -2)


if __name__ == "__main__":
    key = jax.random.PRNGKey(0)
    # Small deterministic input: (batch=2, channels=4, samples=2048).
    x = jax.random.normal(key, (2, 4, 2048), dtype=jnp.float32)

    module = LFCC(sample_rate=16000, n_filter=128, n_lfcc=40,
                  speckwargs={"n_fft": 256, "hop_length": 128})
    y = jax.block_until_ready(module(x))

    y_ref = jax.block_until_ready(_reference_lfcc(x, module))
    assert y.shape == y_ref.shape == (2, 4, 40, 17), y.shape
    assert y.dtype == jnp.float32
    max_err = float(jnp.max(jnp.abs(y - y_ref)))
    assert jnp.allclose(y, y_ref, atol=1e-1, rtol=1e-2), (
        "mismatch vs reference, max abs err = %f" % max_err)

    print("KERNEL_OK")
</pallas_src>

<mosaic_0001>
module attributes {stable_mosaic.version = 11 : i64} {
  func.func @_spec_fbank_db_kernel(%arg0: i32, %arg1: i32, %arg2: memref<1x256x128xf32, #tpu.memory_space<vmem>>, %arg3: memref<512x256xbf16, #tpu.memory_space<vmem>>, %arg4: memref<512x256xbf16, #tpu.memory_space<vmem>>, %arg5: memref<128x256xbf16, #tpu.memory_space<vmem>>, %arg6: memref<1x128x128xf32, #tpu.memory_space<vmem>>, %arg7: memref<1x1x8x128xf32, #tpu.memory_space<vmem>>) attributes {dimension_semantics = [#tpu.dimension_semantics<parallel>, #tpu.dimension_semantics<parallel>], iteration_bounds = array<i64: 8, 1>, scalar_prefetch = 0 : i64, scratch_operands = 0 : i64, tpu.core_type = #tpu.core_type<tc>, window_params = [{transform_indices = @transform_0, window_bounds = array<i64: 1, 256, 128>}, {pipeline_mode = #tpu.pipeline_mode<synchronous>, transform_indices = @transform_1, window_bounds = array<i64: 512, 256>}, {pipeline_mode = #tpu.pipeline_mode<synchronous>, transform_indices = @transform_2, window_bounds = array<i64: 512, 256>}, {pipeline_mode = #tpu.pipeline_mode<synchronous>, transform_indices = @transform_3, window_bounds = array<i64: 128, 256>}, {transform_indices = @transform_4, window_bounds = array<i64: 1, 128, 128>}, {transform_indices = @transform_5, window_bounds = array<i64: 1, 1, 8, 128>}]} {
    %c0 = arith.constant 0 : index
    %c0_0 = arith.constant 0 : index
    %c0_1 = arith.constant 0 : index
    %0 = vector.load %arg2[%c0, %c0_0, %c0_1] : memref<1x256x128xf32, #tpu.memory_space<vmem>>, vector<1x256x128xf32>
    %1 = vector.shape_cast %0 : vector<1x256x128xf32> to vector<256x128xf32>
    %2 = arith.truncf %1 : vector<256x128xf32> to vector<256x128xbf16>
    %3 = arith.extf %2 : vector<256x128xbf16> to vector<256x128xf32>
    %4 = arith.subf %1, %3 : vector<256x128xf32>
    %5 = arith.truncf %4 : vector<256x128xf32> to vector<256x128xbf16>
    %c0_2 = arith.constant 0 : index
    %c0_3 = arith.constant 0 : index
    %6 = vector.load %arg3[%c0_2, %c0_3] : memref<512x256xbf16, #tpu.memory_space<vmem>>, vector<512x256xbf16>
    %cst = arith.constant dense<0.000000e+00> : vector<512x128xf32>
    %7 = tpu.matmul %6, %2, %cst {dimension_numbers = #tpu.dot_dimension_numbers<[1], [0], [0], [1], [0, 0, 1, 1], [], []>} : vector<512x256xbf16>, vector<256x128xbf16>, vector<512x128xf32> -> vector<512x128xf32>
    %cst_4 = arith.constant dense<0.000000e+00> : vector<512x128xf32>
    %8 = tpu.matmul %6, %5, %cst_4 {dimension_numbers = #tpu.dot_dimension_numbers<[1], [0], [0], [1], [0, 0, 1, 1], [], []>} : vector<512x256xbf16>, vector<256x128xbf16>, vector<512x128xf32> -> vector<512x128xf32>
    %9 = arith.addf %7, %8 : vector<512x128xf32>
    %c0_5 = arith.constant 0 : index
    %c0_6 = arith.constant 0 : index
    %10 = vector.load %arg4[%c0_5, %c0_6] : memref<512x256xbf16, #tpu.memory_space<vmem>>, vector<512x256xbf16>
    %cst_7 = arith.constant dense<0.000000e+00> : vector<512x128xf32>
    %11 = tpu.matmul %10, %2, %cst_7 {dimension_numbers = #tpu.dot_dimension_numbers<[1], [0], [0], [1], [0, 0, 1, 1], [], []>} : vector<512x256xbf16>, vector<256x128xbf16>, vector<512x128xf32> -> vector<512x128xf32>
    %12 = arith.addf %9, %11 : vector<512x128xf32>
    %13 = vector.extract_strided_slice %12 {offsets = [0, 0], sizes = [256, 128], strides = [1, 1]} : vector<512x128xf32> to vector<256x128xf32>
    %14 = vector.extract_strided_slice %12 {offsets = [256, 0], sizes = [256, 128], strides = [1, 1]} : vector<512x128xf32> to vector<256x128xf32>
    %15 = arith.mulf %13, %13 : vector<256x128xf32>
    %16 = arith.mulf %14, %14 : vector<256x128xf32>
    %17 = arith.addf %15, %16 : vector<256x128xf32>
    %c0_8 = arith.constant 0 : index
    %c0_9 = arith.constant 0 : index
    %18 = vector.load %arg5[%c0_8, %c0_9] : memref<128x256xbf16, #tpu.memory_space<vmem>>, vector<128x256xbf16>
    %19 = arith.truncf %17 : vector<256x128xf32> to vector<256x128xbf16>
    %cst_10 = arith.constant dense<0.000000e+00> : vector<128x128xf32>
    %20 = tpu.matmul %18, %19, %cst_10 {dimension_numbers = #tpu.dot_dimension_numbers<[1], [0], [0], [1], [0, 0, 1, 1], [], []>} : vector<128x256xbf16>, vector<256x128xbf16>, vector<128x128xf32> -> vector<128x128xf32>
    %cst_11 = arith.constant 1.000000e-10 : f32
    %21 = vector.broadcast %cst_11 : f32 to vector<128x128xf32>
    %22 = arith.maximumf %20, %21 : vector<128x128xf32>
    %23 = math.log %22 : vector<128x128xf32>
    %cst_12 = arith.constant 4.34294462 : f32
    %24 = vector.broadcast %cst_12 : f32 to vector<128x128xf32>
    %25 = arith.mulf %24, %23 : vector<128x128xf32>
    %cst_13 = arith.constant 0.000000e+00 : f32
    %26 = vector.broadcast %cst_13 : f32 to vector<128x128xf32>
    %27 = arith.subf %25, %26 : vector<128x128xf32>
    %c0_14 = arith.constant 0 : index
    %c0_15 = arith.constant 0 : index
    %c0_16 = arith.constant 0 : index
    %28 = vector.load %arg6[%c0_14, %c0_15, %c0_16] : memref<1x128x128xf32, #tpu.memory_space<vmem>>, vector<1x128x128xf32>
    %29 = vector.shape_cast %28 : vector<1x128x128xf32> to vector<128x128xf32>
    %30 = vector.shape_cast %27 : vector<128x128xf32> to vector<1x128x128xf32>
    tpu.vector_store %arg6[%c0_14, %c0_15, %c0_16], %30 {strides = array<i32>} : memref<1x128x128xf32, #tpu.memory_space<vmem>>, vector<1x128x128xf32>,
    %cst_17 = arith.constant dense<0xFF800000> : vector<128xf32>
    %31 = vector.multi_reduction <maximumf>, %27, %cst_17 [1] : vector<128x128xf32> to vector<128xf32>
    %32 = vector.shape_cast %31 : vector<128xf32> to vector<128x1xf32>
    %cst_18 = arith.constant dense<0xFF800000> : vector<1xf32>
    %33 = vector.multi_reduction <maximumf>, %32, %cst_18 [0] : vector<128x1xf32> to vector<1xf32>
    %34 = vector.shape_cast %33 : vector<1xf32> to vector<1x1xf32>
    %35 = vector.shape_cast %34 : vector<1x1xf32> to vector<1x1xf32>
    %36 = vector.broadcast %35 : vector<1x1xf32> to vector<8x128xf32>
    %c0_19 = arith.constant 0 : index
    %c0_20 = arith.constant 0 : index
    %c0_21 = arith.constant 0 : index
    %c0_22 = arith.constant 0 : index
    %37 = vector.load %arg7[%c0_19, %c0_20, %c0_21, %c0_22] : memref<1x1x8x128xf32, #tpu.memory_space<vmem>>, vector<1x1x8x128xf32>
    %38 = vector.shape_cast %37 : vector<1x1x8x128xf32> to vector<8x128xf32>
    %39 = vector.shape_cast %36 : vector<8x128xf32> to vector<1x1x8x128xf32>
    tpu.vector_store %arg7[%c0_19, %c0_20, %c0_21, %c0_22], %39 {strides = array<i32>} : memref<1x1x8x128xf32, #tpu.memory_space<vmem>>, vector<1x1x8x128xf32>,
    return
  }
  func.func @transform_0(%arg0: i32, %arg1: i32) -> (i32, i32, i32) {
    %c0_i32 = arith.constant 0 : i32
    %c0_i32_0 = arith.constant 0 : i32
    return %arg0, %c0_i32, %arg1 : i32, i32, i32
  }
  func.func @transform_1(%arg0: i32, %arg1: i32) -> (i32, i32) {
    %c0_i32 = arith.constant 0 : i32
    %c0_i32_0 = arith.constant 0 : i32
    %c0_i32_1 = arith.constant 0 : i32
    return %c0_i32, %c0_i32_0 : i32, i32
  }
  func.func @transform_2(%arg0: i32, %arg1: i32) -> (i32, i32) {
    %c0_i32 = arith.constant 0 : i32
    %c0_i32_0 = arith.constant 0 : i32
    %c0_i32_1 = arith.constant 0 : i32
    return %c0_i32, %c0_i32_0 : i32, i32
  }
  func.func @transform_3(%arg0: i32, %arg1: i32) -> (i32, i32) {
    %c0_i32 = arith.constant 0 : i32
    %c0_i32_0 = arith.constant 0 : i32
    %c0_i32_1 = arith.constant 0 : i32
    return %c0_i32, %c0_i32_0 : i32, i32
  }
  func.func @transform_4(%arg0: i32, %arg1: i32) -> (i32, i32, i32) {
    %c0_i32 = arith.constant 0 : i32
    %c0_i32_0 = arith.constant 0 : i32
    return %arg0, %c0_i32, %arg1 : i32, i32, i32
  }
  func.func @transform_5(%arg0: i32, %arg1: i32) -> (i32, i32, i32, i32) {
    %c0_i32 = arith.constant 0 : i32
    %c0_i32_0 = arith.constant 0 : i32
    %c0_i32_1 = arith.constant 0 : i32
    return %arg0, %arg1, %c0_i32, %c0_i32_0 : i32, i32, i32, i32
  }
}

</mosaic_0001>

<llo_original>
// kernel: tpu_custom_call.1
$region0: #{tpu_custom_call.1}
  #allocation0 [shape = 'u32[]', space=smem, size = 0x4, offset = 0x4, fixed_abs, tag = 'smem constant byte address 0x4 - core index']
  #allocation1 [shape = 'u32[144,128]{1,0:T(1,128)}', space=vmem, size = 0x12000, scoped, tag = 'internal scratch']
  %s0 = inlined_call_operand.hbm [shape: f32[8,256,128], index: 0, kind: input, shape index: {}]
  %s1 = inlined_call_operand.hbm [shape: bf16[512,256], index: 1, kind: input, shape index: {}]
  %s2 = inlined_call_operand.hbm [shape: bf16[512,256], index: 2, kind: input, shape index: {}]
  %s3 = inlined_call_operand.hbm [shape: bf16[128,256], index: 3, kind: input, shape index: {}]
  %s4 = inlined_call_operand.hbm [shape: f32[8,128,128], index: 4, kind: output, shape index: {0}]
  %s5 = inlined_call_operand.hbm [shape: f32[8,1,8,128], index: 5, kind: output, shape index: {1}]
  %6 = xla_tuple %s4, %s5
  %s7 = sld [smem:[#allocation0]]
  $region73: #{tpu_custom_call.1} parent=0
    _
  %s9 = ssub.s32 1, %s7
  %s10 = scalar_select 0, %s9, %s7
  $region1: #{tpu_custom_call.1} parent=0
    #allocation2 [shape = 'u8[262144]{0}', space=vmem, size = 0x40000, scoped, tag = 'input window, operand 0']
    #allocation3 [shape = 's32[2]{0}', space=sflag, size = 0x8, scoped, tag = 'scoped memory for tpu_custom_call.1']
    #allocation4 [shape = 's32[2]{0}', space=sflag, size = 0x8, scoped, tag = 'scoped memory for tpu_custom_call.1']
    #allocation5 [shape = 'u8[262144]{0}', space=vmem, size = 0x40000, scoped, tag = 'input window, operand 1, single buffered']
    #allocation6 [shape = 's32[1]{0}', space=sflag, size = 0x4, scoped, tag = 'scoped memory for tpu_custom_call.1']
    #allocation7 [shape = 'u8[262144]{0}', space=vmem, size = 0x40000, scoped, tag = 'input window, operand 2, single buffered']
    #allocation8 [shape = 'u8[65536]{0}', space=vmem, size = 0x10000, scoped, tag = 'input window, operand 3, single buffered']
    #allocation9 [shape = 's32[1]{0}', space=sflag, size = 0x4, scoped, tag = 'scoped memory for tpu_custom_call.1']
    #allocation10 [shape = 'u8[131072]{0}', space=vmem, size = 0x20000, scoped, tag = 'output window, operand 0']
    #allocation11 [shape = 'u8[8192]{0}', space=vmem, size = 0x2000, scoped, tag = 'output window, operand 1']
    #allocation12 [shape = 's32[2]{0}', space=sflag, size = 0x8, scoped, tag = 'scoped memory for tpu_custom_call.1']
    %11 = vsyncpa [#allocation3], 0
    %s12 = scalar_lea.sflag [#allocation3], 1
    %13 = vsyncpa %s12, 0
    %14 = vsyncpa [#allocation6], 0
    %15 = vsyncpa [#allocation9], 0
    %16 = vsyncpa [#allocation4], 0
    %s17 = scalar_lea.sflag [#allocation4], 1
    %18 = vsyncpa %s17, 0
    %19 = vsyncpa [#allocation12], 0
    %s20 = scalar_lea.sflag [#allocation12], 1
    %21 = vsyncpa %s20, 0
    loop: start=0, step=1, limit=10
    $region2: #{tpu_custom_call.1} parent=1 // loop_pre_header
      _
    $region3: #{tpu_custom_call.1} parent=1 // loop_header
      %s23 = sphi 0, %s27
      %p24 = scmp.ge.s32.totalorder %s23, 10
      %s30 = sphi 0, %s42
      %s31 = sphi 0, %s38
      %s32 = sphi 0, %s30
      %s33 = sphi 0, %s31
      %s34 = sphi 0, %s32
      %s35 = sphi 0, %s33
      %s47 = sphi 0, %s49
      %s50 = sphi 0, %s47
      %s51 = sphi 0, %s50
      %s67 = sphi 0, %s51
      %s71 = sphi 0, %s71
      %s73 = sphi 0, %s71
      %s74 = sphi 0, %s73
      %s88 = sphi 0, %s74
      %s92 = sphi 0, %s92
      %s94 = sphi 0, %s92
      %s95 = sphi 0, %s94
      %s109 = sphi 0, %s95
      %s113 = sphi 0, %s113
      %s115 = sphi 0, %s113
      %s116 = sphi 0, %s115
      %s130 = sphi 0, %s116
      %s138 = sphi 0, %s140
      %s141 = sphi 0, %s138
      %s142 = sphi 0, %s141
      %s158 = sphi 0, %s142
      %s166 = sphi 0, %s168
      %s169 = sphi 0, %s166
      %s170 = sphi 0, %s169
      %s186 = sphi 0, %s170
    $region4: #{tpu_custom_call.1} parent=1 // loop_header_branch
      %26 = sbr.rel (%p24) target = $region8
    $region5: #{tpu_custom_call.1} parent=1 // loop_body
      %s28 = ssub.s32 %s23, 1
      %s29 = ssub.s32 %s23, 2
      %s36 = sadd.s32 1, %s31
      %p37 = scmp.ge.s32.totalorder %s36, 1
      %s38 = scalar_select %p37, 0, %s36
      %s39 = sadd.s32 1, %s30
      %s40 = scalar_select %p37, %s39, %s30
      %p41 = scmp.ge.s32.totalorder %s40, 8
      %s42 = scalar_select %p41, 0, %s40
      %s43 = ssub.s32 %s30, %s42
      %s44 = ssub.s32 %s31, %s38
      %s45 = sor.u32 %s43, %s44
      %p46 = scmp.eq.s32.totalorder %s45, 0
      %s48 = sadd.s32 %s47, 1
      %s49 = scalar_select %p46, %s47, %s48
      %p52 = pneg %p46
      %p53 = scmp.eq.s32.totalorder %s23, 7
      %p54 = por %p52, %p53
      %p55 = scmp.ne.s32.totalorder %s47, %s50
      %p56 = scmp.eq.s32.totalorder %s23, 0
      %p57 = por %p55, %p56
      %p58 = scmp.ne.s32.totalorder %s47, %s50
      %p59 = scmp.eq.s32.totalorder %s28, 7
      %p60 = por %p58, %p59
      %p61 = scmp.ne.s32.totalorder %s50, %s51
      %p62 = scmp.eq.s32.totalorder %s28, 0
      %p63 = por %p61, %p62
      %p64 = scmp.ne.s32.totalorder %s50, %s51
      %p65 = scmp.eq.s32.totalorder %s29, 7
      %p66 = por %p64, %p65
      %p68 = scmp.ne.s32.totalorder %s51, %s67
      %p69 = scmp.eq.s32.totalorder %s29, 0
      %p70 = por %p68, %p69
      %s72 = sadd.s32 %s71, 1
      %p75 = scmp.eq.s32.totalorder %s23, 7
      %p76 = scmp.ne.s32.totalorder %s71, %s73
      %p77 = scmp.eq.s32.totalorder %s23, 0
      %p78 = por %p76, %p77
      %p79 = scmp.ne.s32.totalorder %s71, %s73
      %p80 = scmp.eq.s32.totalorder %s28, 7
      %p81 = por %p79, %p80
      %p82 = scmp.ne.s32.totalorder %s73, %s74
      %p83 = scmp.eq.s32.totalorder %s28, 0
      %p84 = por %p82, %p83
      %p85 = scmp.ne.s32.totalorder %s73, %s74
      %p86 = scmp.eq.s32.totalorder %s29, 7
      %p87 = por %p85, %p86
      %p89 = scmp.ne.s32.totalorder %s74, %s88
      %p90 = scmp.eq.s32.totalorder %s29, 0
      %p91 = por %p89, %p90
      %s93 = sadd.s32 %s92, 1
      %p96 = scmp.eq.s32.totalorder %s23, 7
      %p97 = scmp.ne.s32.totalorder %s92, %s94
      %p98 = scmp.eq.s32.totalorder %s23, 0
      %p99 = por %p97, %p98
      %p100 = scmp.ne.s32.totalorder %s92, %s94
      %p101 = scmp.eq.s32.totalorder %s28, 7
      %p102 = por %p100, %p101
      %p103 = scmp.ne.s32.totalorder %s94, %s95
      %p104 = scmp.eq.s32.totalorder %s28, 0
      %p105 = por %p103, %p104
      %p106 = scmp.ne.s32.totalorder %s94, %s95
      %p107 = scmp.eq.s32.totalorder %s29, 7
      %p108 = por %p106, %p107
      %p110 = scmp.ne.s32.totalorder %s95, %s109
      %p111 = scmp.eq.s32.totalorder %s29, 0
      %p112 = por %p110, %p111
      %s114 = sadd.s32 %s113, 1
      %p117 = scmp.eq.s32.totalorder %s23, 7
      %p118 = scmp.ne.s32.totalorder %s113, %s115
      %p119 = scmp.eq.s32.totalorder %s23, 0
      %p120 = por %p118, %p119
      %p121 = scmp.ne.s32.totalorder %s113, %s115
      %p122 = scmp.eq.s32.totalorder %s28, 7
      %p123 = por %p121, %p122
      %p124 = scmp.ne.s32.totalorder %s115, %s116
      %p125 = scmp.eq.s32.totalorder %s28, 0
      %p126 = por %p124, %p125
      %p127 = scmp.ne.s32.totalorder %s115, %s116
      %p128 = scmp.eq.s32.totalorder %s29, 7
      %p129 = por %p127, %p128
      %p131 = scmp.ne.s32.totalorder %s116, %s130
      %p132 = scmp.eq.s32.totalorder %s29, 0
      %p133 = por %p131, %p132
      %s134 = ssub.s32 %s30, %s42
      %s135 = ssub.s32 %s31, %s38
      %s136 = sor.u32 %s134, %s135
      %p137 = scmp.eq.s32.totalorder %s136, 0
      %s139 = sadd.s32 %s138, 1
      %s140 = scalar_select %p137, %s138, %s139
      %p143 = pneg %p137
      %p144 = scmp.eq.s32.totalorder %s23, 7
      %p145 = por %p143, %p144
      %p146 = scmp.ne.s32.totalorder %s138, %s141
      %p147 = scmp.eq.s32.totalorder %s23, 0
      %p148 = por %p146, %p147
      %p149 = scmp.ne.s32.totalorder %s138, %s141
      %p150 = scmp.eq.s32.totalorder %s28, 7
      %p151 = por %p149, %p150
      %p152 = scmp.ne.s32.totalorder %s141, %s142
      %p153 = scmp.eq.s32.totalorder %s28, 0
      %p154 = por %p152, %p153
      %p155 = scmp.ne.s32.totalorder %s141, %s142
      %p156 = scmp.eq.s32.totalorder %s29, 7
      %p157 = por %p155, %p156
      %p159 = scmp.ne.s32.totalorder %s142, %s158
      %p160 = scmp.eq.s32.totalorder %s29, 0
      %p161 = por %p159, %p160
      %s162 = ssub.s32 %s30, %s42
      %s163 = ssub.s32 %s31, %s38
      %s164 = sor.u32 %s162, %s163
      %p165 = scmp.eq.s32.totalorder %s164, 0
      %s167 = sadd.s32 %s166, 1
      %s168 = scalar_select %p165, %s166, %s167
      %p171 = pneg %p165
      %p172 = scmp.eq.s32.totalorder %s23, 7
      %p173 = por %p171, %p172
      %p174 = scmp.ne.s32.totalorder %s166, %s169
      %p175 = scmp.eq.s32.totalorder %s23, 0
      %p176 = por %p174, %p175
      %p177 = scmp.ne.s32.totalorder %s166, %s169
      %p178 = scmp.eq.s32.totalorder %s28, 7
      %p179 = por %p177, %p178
      %p180 = scmp.ne.s32.totalorder %s169, %s170
      %p181 = scmp.eq.s32.totalorder %s28, 0
      %p182 = por %p180, %p181
      %p183 = scmp.ne.s32.totalorder %s169, %s170
      %p184 = scmp.eq.s32.totalorder %s29, 7
      %p185 = por %p183, %p184
      %p187 = scmp.ne.s32.totalorder %s170, %s186
      %p188 = scmp.eq.s32.totalorder %s29, 0
      %p189 = por %p187, %p188
      %p190 = scmp.le.s32.totalorder 1, %s23
      %p191 = scmp.lt.s32.totalorder %s23, 9
      %p192 = pnand %p190, %p191
      %p193 = pneg %p192
      // Predicated region
      $region9: #{tpu_custom_call.1} parent=5 // pred_check
        _
      $region10: #{tpu_custom_call.1} parent=5 // pred_check_branch
        %195 = sbr.rel (%p192) target = $region12
      $region11: #{tpu_custom_call.1} parent=5 // pred_region
        %s196 = ssub.s32 %s23, 1
        // Predicated region
        $region13: #{tpu_custom_call.1} parent=11 // pred_check
          %p197 = pneg %p84
        $region14: #{tpu_custom_call.1} parent=11 // pred_check_branch
          %199 = sbr.rel (%p197) target = $region16
        $region15: #{tpu_custom_call.1} parent=11 // pred_region
          %s201 = ssub.s32 8192, 8192
          %202 = vsyncadd [#allocation6], %s201
          %s203 = sshll.u32 [#allocation5], 4
          %s204 = int_to_ptr.vmem [resolvable:$true] %s203
          %209 = dma.hbm_to_vmem [thread:$0]  %s1, 8192, %s204, [#allocation6], 128, 128, 8
        $region16: #{tpu_custom_call.1} parent=11 // pred_fallthru
          _
        // Predicated region
        $region17: #{tpu_custom_call.1} parent=11 // pred_check
          %p210 = pneg %p105
        $region18: #{tpu_custom_call.1} parent=11 // pred_check_branch
          %212 = sbr.rel (%p210) target = $region20
        $region19: #{tpu_custom_call.1} parent=11 // pred_region
          %s214 = ssub.s32 8192, 8192
          %215 = vsyncadd [#allocation6], %s214
          %s216 = sshll.u32 [#allocation7], 4
          %s217 = int_to_ptr.vmem [resolvable:$true] %s216
          %222 = dma.hbm_to_vmem [thread:$0]  %s2, 8192, %s217, [#allocation6], 128, 128, 8
        $region20: #{tpu_custom_call.1} parent=11 // pred_fallthru
          _
        // Predicated region
        $region21: #{tpu_custom_call.1} parent=11 // pred_check
          %p223 = pneg %p126
        $region22: #{tpu_custom_call.1} parent=11 // pred_check_branch
          %225 = sbr.rel (%p223) target = $region24
        $region23: #{tpu_custom_call.1} parent=11 // pred_region
          %s227 = ssub.s32 2048, 2048
          %228 = vsyncadd [#allocation9], %s227
          %s229 = sshll.u32 [#allocation8], 4
          %s230 = int_to_ptr.vmem [resolvable:$true] %s229
          %235 = dma.hbm_to_vmem [thread:$0]  %s3, 2048, %s230, [#allocation9], 128, 128, 8
        $region24: #{tpu_custom_call.1} parent=11 // pred_fallthru
          _
      $region12: #{tpu_custom_call.1} parent=5 // pred_fallthru
        _
      %p236 = scmp.lt.s32.totalorder %s23, 8
      // Predicated region
      $region25: #{tpu_custom_call.1} parent=5 // pred_check
        %p237 = pneg %p236
      $region26: #{tpu_custom_call.1} parent=5 // pred_check_branch
        %239 = sbr.rel (%p237) target = $region28
      $region27: #{tpu_custom_call.1} parent=5 // pred_region
        // Predicated region
        $region29: #{tpu_custom_call.1} parent=27 // pred_check
          %p240 = pneg %p57
        $region30: #{tpu_custom_call.1} parent=27 // pred_check_branch
          %242 = sbr.rel (%p240) target = $region32
        $region31: #{tpu_custom_call.1} parent=27 // pred_region
          %s243 = sand.u32 %s47, 1
          %s244 = scalar_lea.sflag [#allocation3], %s243
          %s245 = sand.u32 %s47, 1
          %s246 = smul.addr %s245, 256
          %s247 = scalar_lea.vmem [#allocation2], %s246
          %s249 = ssub.s32 4096, 4096
          %250 = vsyncadd %s244, %s249
          %s251 = smul.addr %s30, 32
          %s252 = sadd.s32 %s31, %s251
          %s253 = smul.addr %s252, 128
          %s254 = scalar_lea.hbm %s0, %s253
          %s255 = sshll.u32 %s247, 4
          %s256 = int_to_ptr.vmem [resolvable:$true] %s255
          %261 = dma.hbm_to_vmem [thread:$0]  %s254, 4096, %s256, %s244, 128, 128, 8
        $region32: #{tpu_custom_call.1} parent=27 // pred_fallthru
          _
      $region28: #{tpu_custom_call.1} parent=5 // pred_fallthru
        _
      %p262 = scmp.le.s32.totalorder 1, %s23
      %p263 = scmp.lt.s32.totalorder %s23, 9
      %p264 = pnand %p262, %p263
      %p265 = pneg %p264
      // Predicated region
      $region33: #{tpu_custom_call.1} parent=5 // pred_check
        _
      $region34: #{tpu_custom_call.1} parent=5 // pred_check_branch
        %267 = sbr.rel (%p264) target = $region36
      $region35: #{tpu_custom_call.1} parent=5 // pred_region
        %s268 = ssub.s32 %s23, 1
        %s269 = sand.u32 %s50, 1
        %s270 = scalar_lea.sflag [#allocation3], %s269
        %s271 = sand.u32 %s50, 1
        %s272 = smul.addr %s271, 256
        %s273 = scalar_lea.vmem [#allocation2], %s272
        // Predicated region
        $region37: #{tpu_custom_call.1} parent=35 // pred_check
          %p274 = pneg %p63
        $region38: #{tpu_custom_call.1} parent=35 // pred_check_branch
          %276 = sbr.rel (%p274) target = $region40
        $region39: #{tpu_custom_call.1} parent=35 // pred_region
          %277 = dma.done %s270, 4096
        $region40: #{tpu_custom_call.1} parent=35 // pred_fallthru
          _
        // Predicated region
        $region41: #{tpu_custom_call.1} parent=35 // pred_check
          %p278 = pneg %p84
        $region42: #{tpu_custom_call.1} parent=35 // pred_check_branch
          %280 = sbr.rel (%p278) target = $region44
        $region43: #{tpu_custom_call.1} parent=35 // pred_region
          %281 = dma.done [#allocation6], 8192
        $region44: #{tpu_custom_call.1} parent=35 // pred_fallthru
          _
        // Predicated region
        $region45: #{tpu_custom_call.1} parent=35 // pred_check
          %p282 = pneg %p105
        $region46: #{tpu_custom_call.1} parent=35 // pred_check_branch
          %284 = sbr.rel (%p282) target = $region48
        $region47: #{tpu_custom_call.1} parent=35 // pred_region
          %285 = dma.done [#allocation6], 8192
        $region48: #{tpu_custom_call.1} parent=35 // pred_fallthru
          _
        // Predicated region
        $region49: #{tpu_custom_call.1} parent=35 // pred_check
          %p286 = pneg %p126
        $region50: #{tpu_custom_call.1} parent=35 // pred_check_branch
          %288 = sbr.rel (%p286) target = $region52
        $region51: #{tpu_custom_call.1} parent=35 // pred_region
          %289 = dma.done [#allocation9], 2048
        $region52: #{tpu_custom_call.1} parent=35 // pred_fallthru
          _
        %s290 = sand.u32 %s50, 1
        %s291 = scalar_lea.sflag [#allocation3], %s290
        %s292 = sand.u32 %s50, 1
        %s293 = smul.addr %s292, 256
        %s294 = scalar_lea.vmem [#allocation2], %s293
        %p295 = pneg %p63
        %p296 = pneg %p60
        %p297 = pneg %p84
        %p298 = pneg %p81
        %p299 = pneg %p105
        %p300 = pneg %p102
        %p301 = pneg %p126
        %p302 = pneg %p123
        %p303 = pneg %p154
        %p304 = pneg %p151
        %s305 = sand.u32 %s141, 1
        %s306 = scalar_lea.sflag [#allocation4], %s305
        %s307 = sand.u32 %s141, 1
        %s308 = smul.addr %s307, 128
        %s309 = scalar_lea.vmem [#allocation10], %s308
        %p310 = pneg %p182
        %p311 = pneg %p179
        %s312 = sand.u32 %s169, 1
        %s313 = scalar_lea.sflag [#allocation12], %s312
        %s314 = sand.u32 %s169, 1
        %s315 = smul.addr %s314, 8
        %s316 = scalar_lea.vmem [#allocation11], %s315
        %v318 = vld [vmem:[%s273] sm:$0xff]
        %v319 = vld [vmem:[%s273 + $0x8] sm:$0xff]
        %v320 = vld [vmem:[%s273 + $0x10] sm:$0xff]
        %v321 = vld [vmem:[%s273 + $0x18] sm:$0xff]
        %v322 = vld [vmem:[%s273 + $0x20] sm:$0xff]
        %v323 = vld [vmem:[%s273 + $0x28] sm:$0xff]
        %v324 = vld [vmem:[%s273 + $0x30] sm:$0xff]
        %v325 = vld [vmem:[%s273 + $0x38] sm:$0xff]
        %v326 = vld [vmem:[%s273 + $0x40] sm:$0xff]
        %v327 = vld [vmem:[%s273 + $0x48] sm:$0xff]
        %v328 = vld [vmem:[%s273 + $0x50] sm:$0xff]
        %v329 = vld [vmem:[%s273 + $0x58] sm:$0xff]
        %v330 = vld [vmem:[%s273 + $0x60] sm:$0xff]
        %v331 = vld [vmem:[%s273 + $0x68] sm:$0xff]
        %v332 = vld [vmem:[%s273 + $0x70] sm:$0xff]
        %v333 = vld [vmem:[%s273 + $0x78] sm:$0xff]
        %v334 = vld [vmem:[%s273 + $0x80] sm:$0xff]
        %v335 = vld [vmem:[%s273 + $0x88] sm:$0xff]
        %v336 = vld [vmem:[%s273 + $0x90] sm:$0xff]
        %v337 = vld [vmem:[%s273 + $0x98] sm:$0xff]
        %v338 = vld [vmem:[%s273 + $0xa0] sm:$0xff]
        %v339 = vld [vmem:[%s273 + $0xa8] sm:$0xff]
        %v340 = vld [vmem:[%s273 + $0xb0] sm:$0xff]
        %v341 = vld [vmem:[%s273 + $0xb8] sm:$0xff]
        %v342 = vld [vmem:[%s273 + $0xc0] sm:$0xff]
        %v343 = vld [vmem:[%s273 + $0xc8] sm:$0xff]
        %v344 = vld [vmem:[%s273 + $0xd0] sm:$0xff]
        %v345 = vld [vmem:[%s273 + $0xd8] sm:$0xff]
        %v346 = vld [vmem:[%s273 + $0xe0] sm:$0xff]
        %v347 = vld [vmem:[%s273 + $0xe8] sm:$0xff]
        %v348 = vld [vmem:[%s273 + $0xf0] sm:$0xff]
        %v349 = vld [vmem:[%s273 + $0xf8] sm:$0xff]
        %v350 = vpack.c.bf16 %v319, %v318
        %v351 = vpack.c.bf16 %v321, %v320
        %v352 = vpack.c.bf16 %v323, %v322
        %v353 = vpack.c.bf16 %v325, %v324
        %v354 = vpack.c.bf16 %v327, %v326
        %v355 = vpack.c.bf16 %v329, %v328
        %v356 = vpack.c.bf16 %v331, %v330
        %v357 = vpack.c.bf16 %v333, %v332
        %v358 = vpack.c.bf16 %v335, %v334
        %v359 = vpack.c.bf16 %v337, %v336
        %v360 = vpack.c.bf16 %v339, %v338
        %v361 = vpack.c.bf16 %v341, %v340
        %v362 = vpack.c.bf16 %v343, %v342
        %v363 = vpack.c.bf16 %v345, %v344
        %v364 = vpack.c.bf16 %v347, %v346
        %v365 = vpack.c.bf16 %v349, %v348
        %v366 = vunpack.c.l.bf16 %v350
        %v367 = vunpack.c.h.bf16 %v350
        %v368 = vunpack.c.l.bf16 %v351
        %v369 = vunpack.c.h.bf16 %v351
        %v370 = vunpack.c.l.bf16 %v352
        %v371 = vunpack.c.h.bf16 %v352
        %v372 = vunpack.c.l.bf16 %v353
        %v373 = vunpack.c.h.bf16 %v353
        %v374 = vunpack.c.l.bf16 %v354
        %v375 = vunpack.c.h.bf16 %v354
        %v376 = vunpack.c.l.bf16 %v355
        %v377 = vunpack.c.h.bf16 %v355
        %v378 = vunpack.c.l.bf16 %v356
        %v379 = vunpack.c.h.bf16 %v356
        %v380 = vunpack.c.l.bf16 %v357
        %v381 = vunpack.c.h.bf16 %v357
        %v382 = vunpack.c.l.bf16 %v358
        %v383 = vunpack.c.h.bf16 %v358
        %v384 = vunpack.c.l.bf16 %v359
        %v385 = vunpack.c.h.bf16 %v359
        %v386 = vunpack.c.l.bf16 %v360
        %v387 = vunpack.c.h.bf16 %v360
        %v388 = vunpack.c.l.bf16 %v361
        %v389 = vunpack.c.h.bf16 %v361
        %v390 = vunpack.c.l.bf16 %v362
        %v391 = vunpack.c.h.bf16 %v362
        %v392 = vunpack.c.l.bf16 %v363
        %v393 = vunpack.c.h.bf16 %v363
        %v394 = vunpack.c.l.bf16 %v364
        %v395 = vunpack.c.h.bf16 %v364
        %v396 = vunpack.c.l.bf16 %v365
        %v397 = vunpack.c.h.bf16 %v365
        %v398 = vsub.f32 %v318, %v366
        %v399 = vsub.f32 %v319, %v367
        %v400 = vsub.f32 %v320, %v368
        %v401 = vsub.f32 %v321, %v369
        %v402 = vsub.f32 %v322, %v370
        %v403 = vsub.f32 %v323, %v371
        %v404 = vsub.f32 %v324, %v372
        %v405 = vsub.f32 %v325, %v373
        %v406 = vsub.f32 %v326, %v374
        %v407 = vsub.f32 %v327, %v375
        %v408 = vsub.f32 %v328, %v376
        %v409 = vsub.f32 %v329, %v377
        %v410 = vsub.f32 %v330, %v378
        %v411 = vsub.f32 %v331, %v379
        %v412 = vsub.f32 %v332, %v380
        %v413 = vsub.f32 %v333, %v381
        %v414 = vsub.f32 %v334, %v382
        %v415 = vsub.f32 %v335, %v383
        %v416 = vsub.f32 %v336, %v384
        %v417 = vsub.f32 %v337, %v385
        %v418 = vsub.f32 %v338, %v386
        %v419 = vsub.f32 %v339, %v387
        %v420 = vsub.f32 %v340, %v388
        %v421 = vsub.f32 %v341, %v389
        %v422 = vsub.f32 %v342, %v390
        %v423 = vsub.f32 %v343, %v391
        %v424 = vsub.f32 %v344, %v392
        %v425 = vsub.f32 %v345, %v393
        %v426 = vsub.f32 %v346, %v394
        %v427 = vsub.f32 %v347, %v395
        %v428 = vsub.f32 %v348, %v396
        %v429 = vsub.f32 %v349, %v397
        %v430 = vpack.c.bf16 %v399, %v398
        %v431 = vpack.c.bf16 %v401, %v400
        %v432 = vpack.c.bf16 %v403, %v402
        %v433 = vpack.c.bf16 %v405, %v404
        %v434 = vpack.c.bf16 %v407, %v406
        %v435 = vpack.c.bf16 %v409, %v408
        %v436 = vpack.c.bf16 %v411, %v410
        %v437 = vpack.c.bf16 %v413, %v412
        %v438 = vpack.c.bf16 %v415, %v414
        %v439 = vpack.c.bf16 %v417, %v416
        %v440 = vpack.c.bf16 %v419, %v418
        %v441 = vpack.c.bf16 %v421, %v420
        %v442 = vpack.c.bf16 %v423, %v422
        %v443 = vpack.c.bf16 %v425, %v424
        %v444 = vpack.c.bf16 %v427, %v426
        %v445 = vpack.c.bf16 %v429, %v428
        %v446 = vld [vmem:[#allocation5] sm:$0xff]
        %v447 = vld [vmem:[#allocation5 + $0x8] sm:$0xff]
        %v448 = vld [vmem:[#allocation5 + $0x10] sm:$0xff]
        %v449 = vld [vmem:[#allocation5 + $0x18] sm:$0xff]
        %v450 = vld [vmem:[#allocation5 + $0x20] sm:$0xff]
        %v451 = vld [vmem:[#allocation5 + $0x28] sm:$0xff]
        %v452 = vld [vmem:[#allocation5 + $0x30] sm:$0xff]
        %v453 = vld [vmem:[#allocation5 + $0x38] sm:$0xff]
        %v454 = vld [vmem:[#allocation5 + $0x40] sm:$0xff]
        %v455 = vld [vmem:[#allocation5 + $0x48] sm:$0xff]
        %v456 = vld [vmem:[#allocation5 + $0x50] sm:$0xff]
        %v457 = vld [vmem:[#allocation5 + $0x58] sm:$0xff]
        %v458 = vld [vmem:[#allocation5 + $0x60] sm:$0xff]
        %v459 = vld [vmem:[#allocation5 + $0x68] sm:$0xff]
        %v460 = vld [vmem:[#allocation5 + $0x70] sm:$0xff]
        %v461 = vld [vmem:[#allocation5 + $0x78] sm:$0xff]
        %v462 = vld [vmem:[#allocation5 + $0x80] sm:$0xff]
        %v463 = vld [vmem:[#allocation5 + $0x88] sm:$0xff]
        %v464 = vld [vmem:[#allocation5 + $0x90] sm:$0xff]
        %v465 = vld [vmem:[#allocation5 + $0x98] sm:$0xff]
        %v466 = vld [vmem:[#allocation5 + $0xa0] sm:$0xff]
        %v467 = vld [vmem:[#allocation5 + $0xa8] sm:$0xff]
        %v468 = vld [vmem:[#allocation5 + $0xb0] sm:$0xff]
        %v469 = vld [vmem:[#allocation5 + $0xb8] sm:$0xff]
        %v470 = vld [vmem:[#allocation5 + $0xc0] sm:$0xff]
        %v471 = vld [vmem:[#allocation5 + $0xc8] sm:$0xff]
        %v472 = vld [vmem:[#allocation5 + $0xd0] sm:$0xff]
        %v473 = vld [vmem:[#allocation5 + $0xd8] sm:$0xff]
        %v474 = vld [vmem:[#allocation5 + $0xe0] sm:$0xff]
        %v475 = vld [vmem:[#allocation5 + $0xe8] sm:$0xff]
        %v476 = vld [vmem:[#allocation5 + $0xf0] sm:$0xff]
        %v477 = vld [vmem:[#allocation5 + $0xf8] sm:$0xff]
        %v478 = vld [vmem:[#allocation5 + $0x100] sm:$0xff]
        %v479 = vld [vmem:[#allocation5 + $0x108] sm:$0xff]
        %v480 = vld [vmem:[#allocation5 + $0x110] sm:$0xff]
        %v481 = vld [vmem:[#allocation5 + $0x118] sm:$0xff]
        %v482 = vld [vmem:[#allocation5 + $0x120] sm:$0xff]
        %v483 = vld [vmem:[#allocation5 + $0x128] sm:$0xff]
        %v484 = vld [vmem:[#allocation5 + $0x130] sm:$0xff]
        %v485 = vld [vmem:[#allocation5 + $0x138] sm:$0xff]
        %v486 = vld [vmem:[#allocation5 + $0x140] sm:$0xff]
        %v487 = vld [vmem:[#allocation5 + $0x148] sm:$0xff]
        %v488 = vld [vmem:[#allocation5 + $0x150] sm:$0xff]
        %v489 = vld [vmem:[#allocation5 + $0x158] sm:$0xff]
        %v490 = vld [vmem:[#allocation5 + $0x160] sm:$0xff]
        %v491 = vld [vmem:[#allocation5 + $0x168] sm:$0xff]
        %v492 = vld [vmem:[#allocation5 + $0x170] sm:$0xff]
        %v493 = vld [vmem:[#allocation5 + $0x178] sm:$0xff]
        %v494 = vld [vmem:[#allocation5 + $0x180] sm:$0xff]
        %v495 = vld [vmem:[#allocation5 + $0x188] sm:$0xff]
        %v496 = vld [vmem:[#allocation5 + $0x190] sm:$0xff]
        %v497 = vld [vmem:[#allocation5 + $0x198] sm:$0xff]
        %v498 = vld [vmem:[#allocation5 + $0x1a0] sm:$0xff]
        %v499 = vld [vmem:[#allocation5 + $0x1a8] sm:$0xff]
        %v500 = vld [vmem:[#allocation5 + $0x1b0] sm:$0xff]
        %v501 = vld [vmem:[#allocation5 + $0x1b8] sm:$0xff]
        %v502 = vld [vmem:[#allocation5 + $0x1c0] sm:$0xff]
        %v503 = vld [vmem:[#allocation5 + $0x1c8] sm:$0xff]
        %v504 = vld [vmem:[#allocation5 + $0x1d0] sm:$0xff]
        %v505 = vld [vmem:[#allocation5 + $0x1d8] sm:$0xff]
        %v506 = vld [vmem:[#allocation5 + $0x1e0] sm:$0xff]
        %v507 = vld [vmem:[#allocation5 + $0x1e8] sm:$0xff]
        %v508 = vld [vmem:[#allocation5 + $0x1f0] sm:$0xff]
        %v509 = vld [vmem:[#allocation5 + $0x1f8] sm:$0xff]
        %v574 = vunpack.c.l.b16 %v446
        %v575 = vunpack.c.h.b16 %v446
        %v576 = vunpack.c.l.b16 %v447
        %v577 = vunpack.c.h.b16 %v447
        %v578 = vunpack.c.l.b16 %v448
        %v579 = vunpack.c.h.b16 %v448
        %v580 = vunpack.c.l.b16 %v449
        %v581 = vunpack.c.h.b16 %v449
        %v582 = vunpack.c.l.b16 %v450
        %v583 = vunpack.c.h.b16 %v450
        %v584 = vunpack.c.l.b16 %v451
        %v585 = vunpack.c.h.b16 %v451
        %v586 = vunpack.c.l.b16 %v452
        %v587 = vunpack.c.h.b16 %v452
        %v588 = vunpack.c.l.b16 %v453
        %v589 = vunpack.c.h.b16 %v453
        %v590 = vunpack.c.l.b16 %v454
        %v591 = vunpack.c.h.b16 %v454
        %v592 = vunpack.c.l.b16 %v455
        %v593 = vunpack.c.h.b16 %v455
        %v594 = vunpack.c.l.b16 %v456
        %v595 = vunpack.c.h.b16 %v456
        %v596 = vunpack.c.l.b16 %v457
        %v597 = vunpack.c.h.b16 %v457
        %v598 = vunpack.c.l.b16 %v458
        %v599 = vunpack.c.h.b16 %v458
        %v600 = vunpack.c.l.b16 %v459
        %v601 = vunpack.c.h.b16 %v459
        %v602 = vunpack.c.l.b16 %v460
        %v603 = vunpack.c.h.b16 %v460
        %v604 = vunpack.c.l.b16 %v461
        %v605 = vunpack.c.h.b16 %v461
        %v606 = vunpack.c.l.b16 %v462
        %v607 = vunpack.c.h.b16 %v462
        %v608 = vunpack.c.l.b16 %v463
        %v609 = vunpack.c.h.b16 %v463
        %v610 = vunpack.c.l.b16 %v464
        %v611 = vunpack.c.h.b16 %v464
        %v612 = vunpack.c.l.b16 %v465
        %v613 = vunpack.c.h.b16 %v465
        %v614 = vunpack.c.l.b16 %v466
        %v615 = vunpack.c.h.b16 %v466
        %v616 = vunpack.c.l.b16 %v467
        %v617 = vunpack.c.h.b16 %v467
        %v618 = vunpack.c.l.b16 %v468
        %v619 = vunpack.c.h.b16 %v468
        %v620 = vunpack.c.l.b16 %v469
        %v621 = vunpack.c.h.b16 %v469
        %v622 = vunpack.c.l.b16 %v470
        %v623 = vunpack.c.h.b16 %v470
        %v624 = vunpack.c.l.b16 %v471
        %v625 = vunpack.c.h.b16 %v471
        %v626 = vunpack.c.l.b16 %v472
        %v627 = vunpack.c.h.b16 %v472
        %v628 = vunpack.c.l.b16 %v473
        %v629 = vunpack.c.h.b16 %v473
        %v630 = vunpack.c.l.b16 %v474
        %v631 = vunpack.c.h.b16 %v474
        %v632 = vunpack.c.l.b16 %v475
        %v633 = vunpack.c.h.b16 %v475
        %v634 = vunpack.c.l.b16 %v476
        %v635 = vunpack.c.h.b16 %v476
        %v636 = vunpack.c.l.b16 %v477
        %v637 = vunpack.c.h.b16 %v477
        %v638 = vunpack.c.l.b16 %v478
        %v639 = vunpack.c.h.b16 %v478
        %v640 = vunpack.c.l.b16 %v479
        %v641 = vunpack.c.h.b16 %v479
        %v642 = vunpack.c.l.b16 %v480
        %v643 = vunpack.c.h.b16 %v480
        %v644 = vunpack.c.l.b16 %v481
        %v645 = vunpack.c.h.b16 %v481
        %v646 = vunpack.c.l.b16 %v482
        %v647 = vunpack.c.h.b16 %v482
        %v648 = vunpack.c.l.b16 %v483
        %v649 = vunpack.c.h.b16 %v483
        %v650 = vunpack.c.l.b16 %v484
        %v651 = vunpack.c.h.b16 %v484
        %v652 = vunpack.c.l.b16 %v485
        %v653 = vunpack.c.h.b16 %v485
        %v654 = vunpack.c.l.b16 %v486
        %v655 = vunpack.c.h.b16 %v486
        %v656 = vunpack.c.l.b16 %v487
        %v657 = vunpack.c.h.b16 %v487
        %v658 = vunpack.c.l.b16 %v488
        %v659 = vunpack.c.h.b16 %v488
        %v660 = vunpack.c.l.b16 %v489
        %v661 = vunpack.c.h.b16 %v489
        %v662 = vunpack.c.l.b16 %v490
        %v663 = vunpack.c.h.b16 %v490
        %v664 = vunpack.c.l.b16 %v491
        %v665 = vunpack.c.h.b16 %v491
        %v666 = vunpack.c.l.b16 %v492
        %v667 = vunpack.c.h.b16 %v492
        %v668 = vunpack.c.l.b16 %v493
        %v669 = vunpack.c.h.b16 %v493
        %v670 = vunpack.c.l.b16 %v494
        %v671 = vunpack.c.h.b16 %v494
        %v672 = vunpack.c.l.b16 %v495
        %v673 = vunpack.c.h.b16 %v495
        %v674 = vunpack.c.l.b16 %v496
        %v675 = vunpack.c.h.b16 %v496
        %v676 = vunpack.c.l.b16 %v497
        %v677 = vunpack.c.h.b16 %v497
        %v678 = vunpack.c.l.b16 %v498
        %v679 = vunpack.c.h.b16 %v498
        %v680 = vunpack.c.l.b16 %v499
        %v681 = vunpack.c.h.b16 %v499
        %v682 = vunpack.c.l.b16 %v500
        %v683 = vunpack.c.h.b16 %v500
        %v684 = vunpack.c.l.b16 %v501
        %v685 = vunpack.c.h.b16 %v501
        %v686 = vunpack.c.l.b16 %v502
        %v687 = vunpack.c.h.b16 %v502
        %v688 = vunpack.c.l.b16 %v503
        %v689 = vunpack.c.h.b16 %v503
        %v690 = vunpack.c.l.b16 %v504
        %v691 = vunpack.c.h.b16 %v504
        %v692 = vunpack.c.l.b16 %v505
        %v693 = vunpack.c.h.b16 %v505
        %v694 = vunpack.c.l.b16 %v506
        %v695 = vunpack.c.h.b16 %v506
        %v696 = vunpack.c.l.b16 %v507
        %v697 = vunpack.c.h.b16 %v507
        %v698 = vunpack.c.l.b16 %v508
        %v699 = vunpack.c.h.b16 %v508
        %v700 = vunpack.c.l.b16 %v509
        %v701 = vunpack.c.h.b16 %v509
        %v702 = vpack.c.b16 %v576, %v574
        %v703 = vpack.c.b16 %v577, %v575
        %v704 = vpack.c.b16 %v580, %v578
        %v705 = vpack.c.b16 %v581, %v579
        %v706 = vpack.c.b16 %v584, %v582
        %v707 = vpack.c.b16 %v585, %v583
        %v708 = vpack.c.b16 %v588, %v586
        %v709 = vpack.c.b16 %v589, %v587
        %v710 = vpack.c.b16 %v592, %v590
        %v711 = vpack.c.b16 %v593, %v591
        %v712 = vpack.c.b16 %v596, %v594
        %v713 = vpack.c.b16 %v597, %v595
        %v714 = vpack.c.b16 %v600, %v598
        %v715 = vpack.c.b16 %v601, %v599
        %v716 = vpack.c.b16 %v604, %v602
        %v717 = vpack.c.b16 %v605, %v603
        %v718 = vpack.c.b16 %v608, %v606
        %v719 = vpack.c.b16 %v609, %v607
        %v720 = vpack.c.b16 %v612, %v610
        %v721 = vpack.c.b16 %v613, %v611
        %v722 = vpack.c.b16 %v616, %v614
        %v723 = vpack.c.b16 %v617, %v615
        %v724 = vpack.c.b16 %v620, %v618
        %v725 = vpack.c.b16 %v621, %v619
        %v726 = vpack.c.b16 %v624, %v622
        %v727 = vpack.c.b16 %v625, %v623
        %v728 = vpack.c.b16 %v628, %v626
        %v729 = vpack.c.b16 %v629, %v627
        %v730 = vpack.c.b16 %v632, %v630
        %v731 = vpack.c.b16 %v633, %v631
        %v732 = vpack.c.b16 %v636, %v634
        %v733 = vpack.c.b16 %v637, %v635
        %v734 = vpack.c.b16 %v640, %v638
        %v735 = vpack.c.b16 %v641, %v639
        %v736 = vpack.c.b16 %v644, %v642
        %v737 = vpack.c.b16 %v645, %v643
        %v738 = vpack.c.b16 %v648, %v646
        %v739 = vpack.c.b16 %v649, %v647
        %v740 = vpack.c.b16 %v652, %v650
        %v741 = vpack.c.b16 %v653, %v651
        %v742 = vpack.c.b16 %v656, %v654
        %v743 = vpack.c.b16 %v657, %v655
        %v744 = vpack.c.b16 %v660, %v658
        %v745 = vpack.c.b16 %v661, %v659
        %v746 = vpack.c.b16 %v664, %v662
        %v747 = vpack.c.b16 %v665, %v663
        %v748 = vpack.c.b16 %v668, %v666
        %v749 = vpack.c.b16 %v669, %v667
        %v750 = vpack.c.b16 %v672, %v670
        %v751 = vpack.c.b16 %v673, %v671
        %v752 = vpack.c.b16 %v676, %v674
        %v753 = vpack.c.b16 %v677, %v675
        %v754 = vpack.c.b16 %v680, %v678
        %v755 = vpack.c.b16 %v681, %v679
        %v756 = vpack.c.b16 %v684, %v682
        %v757 = vpack.c.b16 %v685, %v683
        %v758 = vpack.c.b16 %v688, %v686
        %v759 = vpack.c.b16 %v689, %v687
        %v760 = vpack.c.b16 %v692, %v690
        %v761 = vpack.c.b16 %v693, %v691
        %v762 = vpack.c.b16 %v696, %v694
        %v763 = vpack.c.b16 %v697, %v695
        %v764 = vpack.c.b16 %v700, %v698
        %v765 = vpack.c.b16 %v701, %v699
        %830 = vmatprep.subr.bf16.mxu0 0
        %831 = vmatpush1.bf16.msra.mxu0 %v437
        %832 = vmatprep.subr.bf16.mxu0 0
        %833 = vmatpush1.bf16.msra.mxu0 %v436
        %834 = vmatprep.subr.bf16.mxu0 0
        %835 = vmatpush1.bf16.msra.mxu0 %v435
        %836 = vmatprep.subr.bf16.mxu0 0
        %837 = vmatpush1.bf16.msra.mxu0 %v434
        %838 = vmatprep.subr.bf16.mxu0 0
        %839 = vmatpush1.bf16.msra.mxu0 %v433
        %840 = vmatprep.subr.bf16.mxu0 0
        %841 = vmatpush1.bf16.msra.mxu0 %v432
        %842 = vmatprep.subr.bf16.mxu0 0
        %843 = vmatpush1.bf16.msra.mxu0 %v431
        %844 = vmatprep.subr.bf16.mxu0 0
        %845 = vmatpush1.bf16.msra.mxu0 %v430
        %846 = vmatprep.subr.bf16.mxu0 0
        %847 = vmatpush2.bf16.msra.mxu0 %v445
        %848 = vmatprep.subr.bf16.mxu0 0
        %849 = vmatpush2.bf16.msra.mxu0 %v444
        %850 = vmatprep.subr.bf16.mxu0 0
        %851 = vmatpush2.bf16.msra.mxu0 %v443
        %852 = vmatprep.subr.bf16.mxu0 0
        %853 = vmatpush2.bf16.msra.mxu0 %v442
        %854 = vmatprep.subr.bf16.mxu0 0
        %855 = vmatpush2.bf16.msra.mxu0 %v441
        %856 = vmatprep.subr.bf16.mxu0 0
        %857 = vmatpush2.bf16.msra.mxu0 %v440
        %858 = vmatprep.subr.bf16.mxu0 0
        %859 = vmatpush2.bf16.msra.mxu0 %v439
        %860 = vmatprep.subr.bf16.mxu0 0
        %861 = vmatpush2.bf16.msra.mxu0 %v438
        %862 = vmatprep.mubr.bf16.mxu0 %v703
        %863 = vmatmul.mubr.bf16.gmra.mxu0 %v702
        %v864 = vpop.f32.mrf.mxu0
        %v865 = vadd.f32 0.0, %v864
        %v866 = vpop.f32.mrf.mxu0
        %v867 = vpop.f32.mrf.mxu0
        %v868 = vadd.f32 0.0, %v867
        %v869 = vpop.f32.mrf.mxu0
        %870 = vmatprep.mubr.bf16.mxu0 %v705
        %871 = vmatmul.mubr.bf16.gmra.mxu0 %v704
        %v872 = vpop.f32.mrf.mxu0
        %v873 = vadd.f32 0.0, %v872
        %v874 = vpop.f32.mrf.mxu0
        %v875 = vpop.f32.mrf.mxu0
        %v876 = vadd.f32 0.0, %v875
        %v877 = vpop.f32.mrf.mxu0
        %878 = vmatprep.mubr.bf16.mxu0 %v707
        %879 = vmatmul.mubr.bf16.gmra.mxu0 %v706
        %v880 = vpop.f32.mrf.mxu0
        %v881 = vadd.f32 0.0, %v880
        %v882 = vpop.f32.mrf.mxu0
        %v883 = vpop.f32.mrf.mxu0
        %v884 = vadd.f32 0.0, %v883
        %v885 = vpop.f32.mrf.mxu0
        %886 = vmatprep.mubr.bf16.mxu0 %v709
        %887 = vmatmul.mubr.bf16.gmra.mxu0 %v708
        %v888 = vpop.f32.mrf.mxu0
        %v889 = vadd.f32 0.0, %v888
        %v890 = vpop.f32.mrf.mxu0
        %v891 = vpop.f32.mrf.mxu0
        %v892 = vadd.f32 0.0, %v891
        %v893 = vpop.f32.mrf.mxu0
        %894 = vmatprep.mubr.bf16.mxu0 %v711
        %895 = vmatmul.mubr.bf16.gmra.mxu0 %v710
        %v896 = vpop.f32.mrf.mxu0
        %v897 = vadd.f32 0.0, %v896
        %v898 = vpop.f32.mrf.mxu0
        %v899 = vpop.f32.mrf.mxu0
        %v900 = vadd.f32 0.0, %v899
        %v901 = vpop.f32.mrf.mxu0
        %902 = vmatprep.mubr.bf16.mxu0 %v713
        %903 = vmatmul.mubr.bf16.gmra.mxu0 %v712
        %v904 = vpop.f32.mrf.mxu0
        %v905 = vadd.f32 0.0, %v904
        %v906 = vpop.f32.mrf.mxu0
        %v907 = vpop.f32.mrf.mxu0
        %v908 = vadd.f32 0.0, %v907
        %v909 = vpop.f32.mrf.mxu0
        %910 = vmatprep.mubr.bf16.mxu0 %v715
        %911 = vmatmul.mubr.bf16.gmra.mxu0 %v714
        %v912 = vpop.f32.mrf.mxu0
        %v913 = vadd.f32 0.0, %v912
        %v914 = vpop.f32.mrf.mxu0
        %v915 = vpop.f32.mrf.mxu0
        %v916 = vadd.f32 0.0, %v915
        %v917 = vpop.f32.mrf.mxu0
        %918 = vmatprep.mubr.bf16.mxu0 %v717
        %919 = vmatmul.mubr.bf16.gmra.mxu0 %v716
        %v920 = vpop.f32.mrf.mxu0
        %v921 = vadd.f32 0.0, %v920
        %v922 = vpop.f32.mrf.mxu0
        %v923 = vpop.f32.mrf.mxu0
        %v924 = vadd.f32 0.0, %v923
        %v925 = vpop.f32.mrf.mxu0
        %926 = vmatprep.mubr.bf16.mxu0 %v719
        %927 = vmatmul.mubr.bf16.gmra.mxu0 %v718
        %v928 = vpop.f32.mrf.mxu0
        %v929 = vadd.f32 0.0, %v928
        %v930 = vpop.f32.mrf.mxu0
        %v931 = vpop.f32.mrf.mxu0
        %v932 = vadd.f32 0.0, %v931
        %v933 = vpop.f32.mrf.mxu0
        %934 = vmatprep.mubr.bf16.mxu0 %v721
        %935 = vmatmul.mubr.bf16.gmra.mxu0 %v720
        %v936 = vpop.f32.mrf.mxu0
        %v937 = vadd.f32 0.0, %v936
        %v938 = vpop.f32.mrf.mxu0
        %v939 = vpop.f32.mrf.mxu0
        %v940 = vadd.f32 0.0, %v939
        %v941 = vpop.f32.mrf.mxu0
        %942 = vmatprep.mubr.bf16.mxu0 %v723
        %943 = vmatmul.mubr.bf16.gmra.mxu0 %v722
        %v944 = vpop.f32.mrf.mxu0
        %v945 = vadd.f32 0.0, %v944
        %v946 = vpop.f32.mrf.mxu0
        %v947 = vpop.f32.mrf.mxu0
        %v948 = vadd.f32 0.0, %v947
        %v949 = vpop.f32.mrf.mxu0
        %950 = vmatprep.mubr.bf16.mxu0 %v725
        %951 = vmatmul.mubr.bf16.gmra.mxu0 %v724
        %v952 = vpop.f32.mrf.mxu0
        %v953 = vadd.f32 0.0, %v952
        %v954 = vpop.f32.mrf.mxu0
        %v955 = vpop.f32.mrf.mxu0
        %v956 = vadd.f32 0.0, %v955
        %v957 = vpop.f32.mrf.mxu0
        %958 = vmatprep.mubr.bf16.mxu0 %v727
        %959 = vmatmul.mubr.bf16.gmra.mxu0 %v726
        %v960 = vpop.f32.mrf.mxu0
        %v961 = vadd.f32 0.0, %v960
        %v962 = vpop.f32.mrf.mxu0
        %v963 = vpop.f32.mrf.mxu0
        %v964 = vadd.f32 0.0, %v963
        %v965 = vpop.f32.mrf.mxu0
        %966 = vmatprep.mubr.bf16.mxu0 %v729
        %967 = vmatmul.mubr.bf16.gmra.mxu0 %v728
        %v968 = vpop.f32.mrf.mxu0
        %v969 = vadd.f32 0.0, %v968
        %v970 = vpop.f32.mrf.mxu0
        %v971 = vpop.f32.mrf.mxu0
        %v972 = vadd.f32 0.0, %v971
        %v973 = vpop.f32.mrf.mxu0
        %974 = vmatprep.mubr.bf16.mxu0 %v731
        %975 = vmatmul.mubr.bf16.gmra.mxu0 %v730
        %v976 = vpop.f32.mrf.mxu0
        %v977 = vadd.f32 0.0, %v976
        %v978 = vpop.f32.mrf.mxu0
        %v979 = vpop.f32.mrf.mxu0
        %v980 = vadd.f32 0.0, %v979
        %v981 = vpop.f32.mrf.mxu0
        %982 = vmatprep.mubr.bf16.mxu0 %v733
        %983 = vmatmul.mubr.bf16.gmra.mxu0 %v732
        %v984 = vpop.f32.mrf.mxu0
        %v985 = vadd.f32 0.0, %v984
        %v986 = vpop.f32.mrf.mxu0
        %v987 = vpop.f32.mrf.mxu0
        %v988 = vadd.f32 0.0, %v987
        %v989 = vpop.f32.mrf.mxu0
        %990 = vmatprep.mubr.bf16.mxu0 %v735
        %991 = vmatmul.mubr.bf16.gmra.mxu0 %v734
        %v992 = vpop.f32.mrf.mxu0
        %v993 = vadd.f32 0.0, %v992
        %v994 = vpop.f32.mrf.mxu0
        %v995 = vpop.f32.mrf.mxu0
        %v996 = vadd.f32 0.0, %v995
        %v997 = vpop.f32.mrf.mxu0
        %998 = vmatprep.mubr.bf16.mxu0 %v737
        %999 = vmatmul.mubr.bf16.gmra.mxu0 %v736
        %v1000 = vpop.f32.mrf.mxu0
        %v1001 = vadd.f32 0.0, %v1000
        %v1002 = vpop.f32.mrf.mxu0
        %v1003 = vpop.f32.mrf.mxu0
        %v1004 = vadd.f32 0.0, %v1003
        %v1005 = vpop.f32.mrf.mxu0
        %1006 = vmatprep.mubr.bf16.mxu0 %v739
        %1007 = vmatmul.mubr.bf16.gmra.mxu0 %v738
        %v1008 = vpop.f32.mrf.mxu0
        %v1009 = vadd.f32 0.0, %v1008
        %v1010 = vpop.f32.mrf.mxu0
        %v1011 = vpop.f32.mrf.mxu0
        %v1012 = vadd.f32 0.0, %v1011
        %v1013 = vpop.f32.mrf.mxu0
        %1014 = vmatprep.mubr.bf16.mxu0 %v741
        %1015 = vmatmul.mubr.bf16.gmra.mxu0 %v740
        %v1016 = vpop.f32.mrf.mxu0
        %v1017 = vadd.f32 0.0, %v1016
        %v1018 = vpop.f32.mrf.mxu0
        %v1019 = vpop.f32.mrf.mxu0
        %v1020 = vadd.f32 0.0, %v1019
        %v1021 = vpop.f32.mrf.mxu0
        %1022 = vmatprep.mubr.bf16.mxu0 %v743
        %1023 = vmatmul.mubr.bf16.gmra.mxu0 %v742
        %v1024 = vpop.f32.mrf.mxu0
        %v1025 = vadd.f32 0.0, %v1024
        %v1026 = vpop.f32.mrf.mxu0
        %v1027 = vpop.f32.mrf.mxu0
        %v1028 = vadd.f32 0.0, %v1027
        %v1029 = vpop.f32.mrf.mxu0
        %1030 = vmatprep.mubr.bf16.mxu0 %v745
        %1031 = vmatmul.mubr.bf16.gmra.mxu0 %v744
        %v1032 = vpop.f32.mrf.mxu0
        %v1033 = vadd.f32 0.0, %v1032
        %v1034 = vpop.f32.mrf.mxu0
        %v1035 = vpop.f32.mrf.mxu0
        %v1036 = vadd.f32 0.0, %v1035
        %v1037 = vpop.f32.mrf.mxu0
        %1038 = vmatprep.mubr.bf16.mxu0 %v747
        %1039 = vmatmul.mubr.bf16.gmra.mxu0 %v746
        %v1040 = vpop.f32.mrf.mxu0
        %v1041 = vadd.f32 0.0, %v1040
        %v1042 = vpop.f32.mrf.mxu0
        %v1043 = vpop.f32.mrf.mxu0
        %v1044 = vadd.f32 0.0, %v1043
        %v1045 = vpop.f32.mrf.mxu0
        %1046 = vmatprep.mubr.bf16.mxu0 %v749
        %1047 = vmatmul.mubr.bf16.gmra.mxu0 %v748
        %v1048 = vpop.f32.mrf.mxu0
        %v1049 = vadd.f32 0.0, %v1048
        %v1050 = vpop.f32.mrf.mxu0
        %v1051 = vpop.f32.mrf.mxu0
        %v1052 = vadd.f32 0.0, %v1051
        %v1053 = vpop.f32.mrf.mxu0
        %1054 = vmatprep.mubr.bf16.mxu0 %v751
        %1055 = vmatmul.mubr.bf16.gmra.mxu0 %v750
        %v1056 = vpop.f32.mrf.mxu0
        %v1057 = vadd.f32 0.0, %v1056
        %v1058 = vpop.f32.mrf.mxu0
        %v1059 = vpop.f32.mrf.mxu0
        %v1060 = vadd.f32 0.0, %v1059
        %v1061 = vpop.f32.mrf.mxu0
        %1062 = vmatprep.mubr.bf16.mxu0 %v753
        %1063 = vmatmul.mubr.bf16.gmra.mxu0 %v752
        %v1064 = vpop.f32.mrf.mxu0
        %v1065 = vadd.f32 0.0, %v1064
        %v1066 = vpop.f32.mrf.mxu0
        %v1067 = vpop.f32.mrf.mxu0
        %v1068 = vadd.f32 0.0, %v1067
        %v1069 = vpop.f32.mrf.mxu0
        %1070 = vmatprep.mubr.bf16.mxu0 %v755
        %1071 = vmatmul.mubr.bf16.gmra.mxu0 %v754
        %v1072 = vpop.f32.mrf.mxu0
        %v1073 = vadd.f32 0.0, %v1072
        %v1074 = vpop.f32.mrf.mxu0
        %v1075 = vpop.f32.mrf.mxu0
        %v1076 = vadd.f32 0.0, %v1075
        %v1077 = vpop.f32.mrf.mxu0
        %1078 = vmatprep.mubr.bf16.mxu0 %v757
        %1079 = vmatmul.mubr.bf16.gmra.mxu0 %v756
        %v1080 = vpop.f32.mrf.mxu0
        %v1081 = vadd.f32 0.0, %v1080
        %v1082 = vpop.f32.mrf.mxu0
        %v1083 = vpop.f32.mrf.mxu0
        %v1084 = vadd.f32 0.0, %v1083
        %v1085 = vpop.f32.mrf.mxu0
        %1086 = vmatprep.mubr.bf16.mxu0 %v759
        %1087 = vmatmul.mubr.bf16.gmra.mxu0 %v758
        %v1088 = vpop.f32.mrf.mxu0
        %v1089 = vadd.f32 0.0, %v1088
        %v1090 = vpop.f32.mrf.mxu0
        %v1091 = vpop.f32.mrf.mxu0
        %v1092 = vadd.f32 0.0, %v1091
        %v1093 = vpop.f32.mrf.mxu0
        %1094 = vmatprep.mubr.bf16.mxu0 %v761
        %1095 = vmatmul.mubr.bf16.gmra.mxu0 %v760
        %v1096 = vpop.f32.mrf.mxu0
        %v1097 = vadd.f32 0.0, %v1096
        %v1098 = vpop.f32.mrf.mxu0
        %v1099 = vpop.f32.mrf.mxu0
        %v1100 = vadd.f32 0.0, %v1099
        %v1101 = vpop.f32.mrf.mxu0
        %1102 = vmatprep.mubr.bf16.mxu0 %v763
        %1103 = vmatmul.mubr.bf16.gmra.mxu0 %v762
        %v1104 = vpop.f32.mrf.mxu0
        %v1105 = vadd.f32 0.0, %v1104
        %v1106 = vpop.f32.mrf.mxu0
        %v1107 = vpop.f32.mrf.mxu0
        %v1108 = vadd.f32 0.0, %v1107
        %v1109 = vpop.f32.mrf.mxu0
        %1110 = vmatprep.mubr.bf16.mxu0 %v765
        %1111 = vmatmul.mubr.bf16.gmra.mxu0 %v764
        %v1112 = vpop.f32.mrf.mxu0
        %v1113 = vadd.f32 0.0, %v1112
        %v1114 = vpop.f32.mrf.mxu0
        %v1115 = vpop.f32.mrf.mxu0
        %v1116 = vadd.f32 0.0, %v1115
        %v1117 = vpop.f32.mrf.mxu0
        %1118 = vdwg.mxu0
        %1119 = vmatprep.subr.bf16.mxu0 0
        %1120 = vmatpush1.bf16.msra.mxu0 %v357
        %1121 = vmatprep.subr.bf16.mxu0 0
        %1122 = vmatpush1.bf16.msra.mxu0 %v356
        %1123 = vmatprep.subr.bf16.mxu0 0
        %1124 = vmatpush1.bf16.msra.mxu0 %v355
        %1125 = vmatprep.subr.bf16.mxu0 0
        %1126 = vmatpush1.bf16.msra.mxu0 %v354
        %1127 = vmatprep.subr.bf16.mxu0 0
        %1128 = vmatpush1.bf16.msra.mxu0 %v353
        %1129 = vmatprep.subr.bf16.mxu0 0
        %1130 = vmatpush1.bf16.msra.mxu0 %v352
        %1131 = vmatprep.subr.bf16.mxu0 0
        %1132 = vmatpush1.bf16.msra.mxu0 %v351
        %1133 = vmatprep.subr.bf16.mxu0 0
        %1134 = vmatpush1.bf16.msra.mxu0 %v350
        %1135 = vmatprep.subr.bf16.mxu0 0
        %1136 = vmatpush2.bf16.msra.mxu0 %v365
        %1137 = vmatprep.subr.bf16.mxu0 0
        %1138 = vmatpush2.bf16.msra.mxu0 %v364
        %1139 = vmatprep.subr.bf16.mxu0 0
        %1140 = vmatpush2.bf16.msra.mxu0 %v363
        %1141 = vmatprep.subr.bf16.mxu0 0
        %1142 = vmatpush2.bf16.msra.mxu0 %v362
        %1143 = vmatprep.subr.bf16.mxu0 0
        %1144 = vmatpush2.bf16.msra.mxu0 %v361
        %1145 = vmatprep.subr.bf16.mxu0 0
        %1146 = vmatpush2.bf16.msra.mxu0 %v360
        %1147 = vmatprep.subr.bf16.mxu0 0
        %1148 = vmatpush2.bf16.msra.mxu0 %v359
        %1149 = vmatprep.subr.bf16.mxu0 0
        %1150 = vmatpush2.bf16.msra.mxu0 %v358
        %1151 = vmatprep.mubr.bf16.mxu0 %v703
        %1152 = vmatmul.mubr.bf16.gmra.mxu0 %v702
        %v1153 = vpop.f32.mrf.mxu0
        %v1154 = vadd.f32 %v865, %v1153
        %v1155 = vpop.f32.mrf.mxu0
        %v1156 = vpop.f32.mrf.mxu0
        %v1157 = vadd.f32 %v868, %v1156
        %v1158 = vpop.f32.mrf.mxu0
        %1159 = vmatprep.mubr.bf16.mxu0 %v705
        %1160 = vmatmul.mubr.bf16.gmra.mxu0 %v704
        %v1161 = vpop.f32.mrf.mxu0
        %v1162 = vadd.f32 %v873, %v1161
        %v1163 = vpop.f32.mrf.mxu0
        %v1164 = vpop.f32.mrf.mxu0
        %v1165 = vadd.f32 %v876, %v1164
        %v1166 = vpop.f32.mrf.mxu0
        %1167 = vmatprep.mubr.bf16.mxu0 %v707
        %1168 = vmatmul.mubr.bf16.gmra.mxu0 %v706
        %v1169 = vpop.f32.mrf.mxu0
        %v1170 = vadd.f32 %v881, %v1169
        %v1171 = vpop.f32.mrf.mxu0
        %v1172 = vpop.f32.mrf.mxu0
        %v1173 = vadd.f32 %v884, %v1172
        %v1174 = vpop.f32.mrf.mxu0
        %1175 = vmatprep.mubr.bf16.mxu0 %v709
        %1176 = vmatmul.mubr.bf16.gmra.mxu0 %v708
        %v1177 = vpop.f32.mrf.mxu0
        %v1178 = vadd.f32 %v889, %v1177
        %v1179 = vpop.f32.mrf.mxu0
        %v1180 = vpop.f32.mrf.mxu0
        %v1181 = vadd.f32 %v892, %v1180
        %v1182 = vpop.f32.mrf.mxu0
        %1183 = vmatprep.mubr.bf16.mxu0 %v711
        %1184 = vmatmul.mubr.bf16.gmra.mxu0 %v710
        %v1185 = vpop.f32.mrf.mxu0
        %v1186 = vadd.f32 %v897, %v1185
        %v1187 = vpop.f32.mrf.mxu0
        %v1188 = vpop.f32.mrf.mxu0
        %v1189 = vadd.f32 %v900, %v1188
        %v1190 = vpop.f32.mrf.mxu0
        %1191 = vmatprep.mubr.bf16.mxu0 %v713
        %1192 = vmatmul.mubr.bf16.gmra.mxu0 %v712
        %v1193 = vpop.f32.mrf.mxu0
        %v1194 = vadd.f32 %v905, %v1193
        %v1195 = vpop.f32.mrf.mxu0
        %v1196 = vpop.f32.mrf.mxu0
        %v1197 = vadd.f32 %v908, %v1196
        %v1198 = vpop.f32.mrf.mxu0
        %1199 = vmatprep.mubr.bf16.mxu0 %v715
        %1200 = vmatmul.mubr.bf16.gmra.mxu0 %v714
        %v1201 = vpop.f32.mrf.mxu0
        %v1202 = vadd.f32 %v913, %v1201
        %v1203 = vpop.f32.mrf.mxu0
        %v1204 = vpop.f32.mrf.mxu0
        %v1205 = vadd.f32 %v916, %v1204
        %v1206 = vpop.f32.mrf.mxu0
        %1207 = vmatprep.mubr.bf16.mxu0 %v717
        %1208 = vmatmul.mubr.bf16.gmra.mxu0 %v716
        %v1209 = vpop.f32.mrf.mxu0
        %v1210 = vadd.f32 %v921, %v1209
        %v1211 = vpop.f32.mrf.mxu0
        %v1212 = vpop.f32.mrf.mxu0
        %v1213 = vadd.f32 %v924, %v1212
        %v1214 = vpop.f32.mrf.mxu0
        %1215 = vmatprep.mubr.bf16.mxu0 %v719
        %1216 = vmatmul.mubr.bf16.gmra.mxu0 %v718
        %v1217 = vpop.f32.mrf.mxu0
        %v1218 = vadd.f32 %v929, %v1217
        %v1219 = vpop.f32.mrf.mxu0
        %v1220 = vpop.f32.mrf.mxu0
        %v1221 = vadd.f32 %v932, %v1220
        %v1222 = vpop.f32.mrf.mxu0
        %1223 = vmatprep.mubr.bf16.mxu0 %v721
        %1224 = vmatmul.mubr.bf16.gmra.mxu0 %v720
        %v1225 = vpop.f32.mrf.mxu0
        %v1226 = vadd.f32 %v937, %v1225
        %v1227 = vpop.f32.mrf.mxu0
        %v1228 = vpop.f32.mrf.mxu0
        %v1229 = vadd.f32 %v940, %v1228
        %v1230 = vpop.f32.mrf.mxu0
        %1231 = vmatprep.mubr.bf16.mxu0 %v723
        %1232 = vmatmul.mubr.bf16.gmra.mxu0 %v722
        %v1233 = vpop.f32.mrf.mxu0
        %v1234 = vadd.f32 %v945, %v1233
        %v1235 = vpop.f32.mrf.mxu0
        %v1236 = vpop.f32.mrf.mxu0
        %v1237 = vadd.f32 %v948, %v1236
        %v1238 = vpop.f32.mrf.mxu0
        %1239 = vmatprep.mubr.bf16.mxu0 %v725
        %1240 = vmatmul.mubr.bf16.gmra.mxu0 %v724
        %v1241 = vpop.f32.mrf.mxu0
        %v1242 = vadd.f32 %v953, %v1241
        %v1243 = vpop.f32.mrf.mxu0
        %v1244 = vpop.f32.mrf.mxu0
        %v1245 = vadd.f32 %v956, %v1244
        %v1246 = vpop.f32.mrf.mxu0
        %1247 = vmatprep.mubr.bf16.mxu0 %v727
        %1248 = vmatmul.mubr.bf16.gmra.mxu0 %v726
        %v1249 = vpop.f32.mrf.mxu0
        %v1250 = vadd.f32 %v961, %v1249
        %v1251 = vpop.f32.mrf.mxu0
        %v1252 = vpop.f32.mrf.mxu0
        %v1253 = vadd.f32 %v964, %v1252
        %v1254 = vpop.f32.mrf.mxu0
        %1255 = vmatprep.mubr.bf16.mxu0 %v729
        %1256 = vmatmul.mubr.bf16.gmra.mxu0 %v728
        %v1257 = vpop.f32.mrf.mxu0
        %v1258 = vadd.f32 %v969, %v1257
        %v1259 = vpop.f32.mrf.mxu0
        %v1260 = vpop.f32.mrf.mxu0
        %v1261 = vadd.f32 %v972, %v1260
        %v1262 = vpop.f32.mrf.mxu0
        %1263 = vmatprep.mubr.bf16.mxu0 %v731
        %1264 = vmatmul.mubr.bf16.gmra.mxu0 %v730
        %v1265 = vpop.f32.mrf.mxu0
        %v1266 = vadd.f32 %v977, %v1265
        %v1267 = vpop.f32.mrf.mxu0
        %v1268 = vpop.f32.mrf.mxu0
        %v1269 = vadd.f32 %v980, %v1268
        %v1270 = vpop.f32.mrf.mxu0
        %1271 = vmatprep.mubr.bf16.mxu0 %v733
        %1272 = vmatmul.mubr.bf16.gmra.mxu0 %v732
        %v1273 = vpop.f32.mrf.mxu0
        %v1274 = vadd.f32 %v985, %v1273
        %v1275 = vpop.f32.mrf.mxu0
        %v1276 = vpop.f32.mrf.mxu0
        %v1277 = vadd.f32 %v988, %v1276
        %v1278 = vpop.f32.mrf.mxu0
        %1279 = vmatprep.mubr.bf16.mxu0 %v735
        %1280 = vmatmul.mubr.bf16.gmra.mxu0 %v734
        %v1281 = vpop.f32.mrf.mxu0
        %v1282 = vadd.f32 %v993, %v1281
        %v1283 = vpop.f32.mrf.mxu0
        %v1284 = vpop.f32.mrf.mxu0
        %v1285 = vadd.f32 %v996, %v1284
        %v1286 = vpop.f32.mrf.mxu0
        %1287 = vmatprep.mubr.bf16.mxu0 %v737
        %1288 = vmatmul.mubr.bf16.gmra.mxu0 %v736
        %v1289 = vpop.f32.mrf.mxu0
        %v1290 = vadd.f32 %v1001, %v1289
        %v1291 = vpop.f32.mrf.mxu0
        %v1292 = vpop.f32.mrf.mxu0
        %v1293 = vadd.f32 %v1004, %v1292
        %v1294 = vpop.f32.mrf.mxu0
        %1295 = vmatprep.mubr.bf16.mxu0 %v739
        %1296 = vmatmul.mubr.bf16.gmra.mxu0 %v738
        %v1297 = vpop.f32.mrf.mxu0
        %v1298 = vadd.f32 %v1009, %v1297
        %v1299 = vpop.f32.mrf.mxu0
        %v1300 = vpop.f32.mrf.mxu0
        %v1301 = vadd.f32 %v1012, %v1300
        %v1302 = vpop.f32.mrf.mxu0
        %1303 = vmatprep.mubr.bf16.mxu0 %v741
        %1304 = vmatmul.mubr.bf16.gmra.mxu0 %v740
        %v1305 = vpop.f32.mrf.mxu0
        %v1306 = vadd.f32 %v1017, %v1305
        %v1307 = vpop.f32.mrf.mxu0
        %v1308 = vpop.f32.mrf.mxu0
        %v1309 = vadd.f32 %v1020, %v1308
        %v1310 = vpop.f32.mrf.mxu0
        %1311 = vmatprep.mubr.bf16.mxu0 %v743
        %1312 = vmatmul.mubr.bf16.gmra.mxu0 %v742
        %v1313 = vpop.f32.mrf.mxu0
        %v1314 = vadd.f32 %v1025, %v1313
        %v1315 = vpop.f32.mrf.mxu0
        %v1316 = vpop.f32.mrf.mxu0
        %v1317 = vadd.f32 %v1028, %v1316
        %v1318 = vpop.f32.mrf.mxu0
        %1319 = vmatprep.mubr.bf16.mxu0 %v745
        %1320 = vmatmul.mubr.bf16.gmra.mxu0 %v744
        %v1321 = vpop.f32.mrf.mxu0
        %v1322 = vadd.f32 %v1033, %v1321
        %v1323 = vpop.f32.mrf.mxu0
        %v1324 = vpop.f32.mrf.mxu0
        %v1325 = vadd.f32 %v1036, %v1324
        %v1326 = vpop.f32.mrf.mxu0
        %1327 = vmatprep.mubr.bf16.mxu0 %v747
        %1328 = vmatmul.mubr.bf16.gmra.mxu0 %v746
        %v1329 = vpop.f32.mrf.mxu0
        %v1330 = vadd.f32 %v1041, %v1329
        %v1331 = vpop.f32.mrf.mxu0
        %v1332 = vpop.f32.mrf.mxu0
        %v1333 = vadd.f32 %v1044, %v1332
        %v1334 = vpop.f32.mrf.mxu0
        %1335 = vmatprep.mubr.bf16.mxu0 %v749
        %1336 = vmatmul.mubr.bf16.gmra.mxu0 %v748
        %v1337 = vpop.f32.mrf.mxu0
        %v1338 = vadd.f32 %v1049, %v1337
        %v1339 = vpop.f32.mrf.mxu0
        %v1340 = vpop.f32.mrf.mxu0
        %v1341 = vadd.f32 %v1052, %v1340
        %v1342 = vpop.f32.mrf.mxu0
        %1343 = vmatprep.mubr.bf16.mxu0 %v751
        %1344 = vmatmul.mubr.bf16.gmra.mxu0 %v750
        %v1345 = vpop.f32.mrf.mxu0
        %v1346 = vadd.f32 %v1057, %v1345
        %v1347 = vpop.f32.mrf.mxu0
        %v1348 = vpop.f32.mrf.mxu0
        %v1349 = vadd.f32 %v1060, %v1348
        %v1350 = vpop.f32.mrf.mxu0
        %1351 = vmatprep.mubr.bf16.mxu0 %v753
        %1352 = vmatmul.mubr.bf16.gmra.mxu0 %v752
        %v1353 = vpop.f32.mrf.mxu0
        %v1354 = vadd.f32 %v1065, %v1353
        %v1355 = vpop.f32.mrf.mxu0
        %v1356 = vpop.f32.mrf.mxu0
        %v1357 = vadd.f32 %v1068, %v1356
        %v1358 = vpop.f32.mrf.mxu0
        %1359 = vmatprep.mubr.bf16.mxu0 %v755
        %1360 = vmatmul.mubr.bf16.gmra.mxu0 %v754
        %v1361 = vpop.f32.mrf.mxu0
        %v1362 = vadd.f32 %v1073, %v1361
        %v1363 = vpop.f32.mrf.mxu0
        %v1364 = vpop.f32.mrf.mxu0
        %v1365 = vadd.f32 %v1076, %v1364
        %v1366 = vpop.f32.mrf.mxu0
        %1367 = vmatprep.mubr.bf16.mxu0 %v757
        %1368 = vmatmul.mubr.bf16.gmra.mxu0 %v756
        %v1369 = vpop.f32.mrf.mxu0
        %v1370 = vadd.f32 %v1081, %v1369
        %v1371 = vpop.f32.mrf.mxu0
        %v1372 = vpop.f32.mrf.mxu0
        %v1373 = vadd.f32 %v1084, %v1372
        %v1374 = vpop.f32.mrf.mxu0
        %1375 = vmatprep.mubr.bf16.mxu0 %v759
        %1376 = vmatmul.mubr.bf16.gmra.mxu0 %v758
        %v1377 = vpop.f32.mrf.mxu0
        %v1378 = vadd.f32 %v1089, %v1377
        %v1379 = vpop.f32.mrf.mxu0
        %v1380 = vpop.f32.mrf.mxu0
        %v1381 = vadd.f32 %v1092, %v1380
        %v1382 = vpop.f32.mrf.mxu0
        %1383 = vmatprep.mubr.bf16.mxu0 %v761
        %1384 = vmatmul.mubr.bf16.gmra.mxu0 %v760
        %v1385 = vpop.f32.mrf.mxu0
        %v1386 = vadd.f32 %v1097, %v1385
        %v1387 = vpop.f32.mrf.mxu0
        %v1388 = vpop.f32.mrf.mxu0
        %v1389 = vadd.f32 %v1100, %v1388
        %v1390 = vpop.f32.mrf.mxu0
        %1391 = vmatprep.mubr.bf16.mxu0 %v763
        %1392 = vmatmul.mubr.bf16.gmra.mxu0 %v762
        %v1393 = vpop.f32.mrf.mxu0
        %v1394 = vadd.f32 %v1105, %v1393
        %v1395 = vpop.f32.mrf.mxu0
        %v1396 = vpop.f32.mrf.mxu0
        %v1397 = vadd.f32 %v1108, %v1396
        %v1398 = vpop.f32.mrf.mxu0
        %1399 = vmatprep.mubr.bf16.mxu0 %v765
        %1400 = vmatmul.mubr.bf16.gmra.mxu0 %v764
        %v1401 = vpop.f32.mrf.mxu0
        %v1402 = vadd.f32 %v1113, %v1401
        %v1403 = vpop.f32.mrf.mxu0
        %v1404 = vpop.f32.mrf.mxu0
        %v1405 = vadd.f32 %v1116, %v1404
        %v1406 = vpop.f32.mrf.mxu0
        %1407 = vdwg.mxu0
        %v1408 = vld [vmem:[#allocation7] sm:$0xff]
        %v1409 = vld [vmem:[#allocation7 + $0x8] sm:$0xff]
        %v1410 = vld [vmem:[#allocation7 + $0x10] sm:$0xff]
        %v1411 = vld [vmem:[#allocation7 + $0x18] sm:$0xff]
        %v1412 = vld [vmem:[#allocation7 + $0x20] sm:$0xff]
        %v1413 = vld [vmem:[#allocation7 + $0x28] sm:$0xff]
        %v1414 = vld [vmem:[#allocation7 + $0x30] sm:$0xff]
        %v1415 = vld [vmem:[#allocation7 + $0x38] sm:$0xff]
        %v1416 = vld [vmem:[#allocation7 + $0x40] sm:$0xff]
        %v1417 = vld [vmem:[#allocation7 + $0x48] sm:$0xff]
        %v1418 = vld [vmem:[#allocation7 + $0x50] sm:$0xff]
        %v1419 = vld [vmem:[#allocation7 + $0x58] sm:$0xff]
        %v1420 = vld [vmem:[#allocation7 + $0x60] sm:$0xff]
        %v1421 = vld [vmem:[#allocation7 + $0x68] sm:$0xff]
        %v1422 = vld [vmem:[#allocation7 + $0x70] sm:$0xff]
        %v1423 = vld [vmem:[#allocation7 + $0x78] sm:$0xff]
        %v1424 = vld [vmem:[#allocation7 + $0x80] sm:$0xff]
        %v1425 = vld [vmem:[#allocation7 + $0x88] sm:$0xff]
        %v1426 = vld [vmem:[#allocation7 + $0x90] sm:$0xff]
        %v1427 = vld [vmem:[#allocation7 + $0x98] sm:$0xff]
        %v1428 = vld [vmem:[#allocation7 + $0xa0] sm:$0xff]
        %v1429 = vld [vmem:[#allocation7 + $0xa8] sm:$0xff]
        %v1430 = vld [vmem:[#allocation7 + $0xb0] sm:$0xff]
        %v1431 = vld [vmem:[#allocation7 + $0xb8] sm:$0xff]
        %v1432 = vld [vmem:[#allocation7 + $0xc0] sm:$0xff]
        %v1433 = vld [vmem:[#allocation7 + $0xc8] sm:$0xff]
        %v1434 = vld [vmem:[#allocation7 + $0xd0] sm:$0xff]
        %v1435 = vld [vmem:[#allocation7 + $0xd8] sm:$0xff]
        %v1436 = vld [vmem:[#allocation7 + $0xe0] sm:$0xff]
        %v1437 = vld [vmem:[#allocation7 + $0xe8] sm:$0xff]
        %v1438 = vld [vmem:[#allocation7 + $0xf0] sm:$0xff]
        %v1439 = vld [vmem:[#allocation7 + $0xf8] sm:$0xff]
        %v1440 = vld [vmem:[#allocation7 + $0x100] sm:$0xff]
        %v1441 = vld [vmem:[#allocation7 + $0x108] sm:$0xff]
        %v1442 = vld [vmem:[#allocation7 + $0x110] sm:$0xff]
        %v1443 = vld [vmem:[#allocation7 + $0x118] sm:$0xff]
        %v1444 = vld [vmem:[#allocation7 + $0x120] sm:$0xff]
        %v1445 = vld [vmem:[#allocation7 + $0x128] sm:$0xff]
        %v1446 = vld [vmem:[#allocation7 + $0x130] sm:$0xff]
        %v1447 = vld [vmem:[#allocation7 + $0x138] sm:$0xff]
        %v1448 = vld [vmem:[#allocation7 + $0x140] sm:$0xff]
        %v1449 = vld [vmem:[#allocation7 + $0x148] sm:$0xff]
        %v1450 = vld [vmem:[#allocation7 + $0x150] sm:$0xff]
        %v1451 = vld [vmem:[#allocation7 + $0x158] sm:$0xff]
        %v1452 = vld [vmem:[#allocation7 + $0x160] sm:$0xff]
        %v1453 = vld [vmem:[#allocation7 + $0x168] sm:$0xff]
        %v1454 = vld [vmem:[#allocation7 + $0x170] sm:$0xff]
        %v1455 = vld [vmem:[#allocation7 + $0x178] sm:$0xff]
        %v1456 = vld [vmem:[#allocation7 + $0x180] sm:$0xff]
        %v1457 = vld [vmem:[#allocation7 + $0x188] sm:$0xff]
        %v1458 = vld [vmem:[#allocation7 + $0x190] sm:$0xff]
        %v1459 = vld [vmem:[#allocation7 + $0x198] sm:$0xff]
        %v1460 = vld [vmem:[#allocation7 + $0x1a0] sm:$0xff]
        %v1461 = vld [vmem:[#allocation7 + $0x1a8] sm:$0xff]
        %v1462 = vld [vmem:[#allocation7 + $0x1b0] sm:$0xff]
        %v1463 = vld [vmem:[#allocation7 + $0x1b8] sm:$0xff]
        %v1464 = vld [vmem:[#allocation7 + $0x1c0] sm:$0xff]
        %v1465 = vld [vmem:[#allocation7 + $0x1c8] sm:$0xff]
        %v1466 = vld [vmem:[#allocation7 + $0x1d0] sm:$0xff]
        %v1467 = vld [vmem:[#allocation7 + $0x1d8] sm:$0xff]
        %v1468 = vld [vmem:[#allocation7 + $0x1e0] sm:$0xff]
        %v1469 = vld [vmem:[#allocation7 + $0x1e8] sm:$0xff]
        %v1470 = vld [vmem:[#allocation7 + $0x1f0] sm:$0xff]
        %v1471 = vld [vmem:[#allocation7 + $0x1f8] sm:$0xff]
        %v1536 = vunpack.c.l.b16 %v1408
        %v1537 = vunpack.c.h.b16 %v1408
        %v1538 = vunpack.c.l.b16 %v1409
        %v1539 = vunpack.c.h.b16 %v1409
        %v1540 = vunpack.c.l.b16 %v1410
        %v1541 = vunpack.c.h.b16 %v1410
        %v1542 = vunpack.c.l.b16 %v1411
        %v1543 = vunpack.c.h.b16 %v1411
        %v1544 = vunpack.c.l.b16 %v1412
        %v1545 = vunpack.c.h.b16 %v1412
        %v1546 = vunpack.c.l.b16 %v1413
        %v1547 = vunpack.c.h.b16 %v1413
        %v1548 = vunpack.c.l.b16 %v1414
        %v1549 = vunpack.c.h.b16 %v1414
        %v1550 = vunpack.c.l.b16 %v1415
        %v1551 = vunpack.c.h.b16 %v1415
        %v1552 = vunpack.c.l.b16 %v1416
        %v1553 = vunpack.c.h.b16 %v1416
        %v1554 = vunpack.c.l.b16 %v1417
        %v1555 = vunpack.c.h.b16 %v1417
        %v1556 = vunpack.c.l.b16 %v1418
        %v1557 = vunpack.c.h.b16 %v1418
        %v1558 = vunpack.c.l.b16 %v1419
        %v1559 = vunpack.c.h.b16 %v1419
        %v1560 = vunpack.c.l.b16 %v1420
        %v1561 = vunpack.c.h.b16 %v1420
        %v1562 = vunpack.c.l.b16 %v1421
        %v1563 = vunpack.c.h.b16 %v1421
        %v1564 = vunpack.c.l.b16 %v1422
        %v1565 = vunpack.c.h.b16 %v1422
        %v1566 = vunpack.c.l.b16 %v1423
        %v1567 = vunpack.c.h.b16 %v1423
        %v1568 = vunpack.c.l.b16 %v1424
        %v1569 = vunpack.c.h.b16 %v1424
        %v1570 = vunpack.c.l.b16 %v1425
        %v1571 = vunpack.c.h.b16 %v1425
        %v1572 = vunpack.c.l.b16 %v1426
        %v1573 = vunpack.c.h.b16 %v1426
        %v1574 = vunpack.c.l.b16 %v1427
        %v1575 = vunpack.c.h.b16 %v1427
        %v1576 = vunpack.c.l.b16 %v1428
        %v1577 = vunpack.c.h.b16 %v1428
        %v1578 = vunpack.c.l.b16 %v1429
        %v1579 = vunpack.c.h.b16 %v1429
        %v1580 = vunpack.c.l.b16 %v1430
        %v1581 = vunpack.c.h.b16 %v1430
        %v1582 = vunpack.c.l.b16 %v1431
        %v1583 = vunpack.c.h.b16 %v1431
        %v1584 = vunpack.c.l.b16 %v1432
        %v1585 = vunpack.c.h.b16 %v1432
        %v1586 = vunpack.c.l.b16 %v1433
        %v1587 = vunpack.c.h.b16 %v1433
        %v1588 = vunpack.c.l.b16 %v1434
        %v1589 = vunpack.c.h.b16 %v1434
        %v1590 = vunpack.c.l.b16 %v1435
        %v1591 = vunpack.c.h.b16 %v1435
        %v1592 = vunpack.c.l.b16 %v1436
        %v1593 = vunpack.c.h.b16 %v1436
        %v1594 = vunpack.c.l.b16 %v1437
        %v1595 = vunpack.c.h.b16 %v1437
        %v1596 = vunpack.c.l.b16 %v1438
        %v1597 = vunpack.c.h.b16 %v1438
        %v1598 = vunpack.c.l.b16 %v1439
        %v1599 = vunpack.c.h.b16 %v1439
        %v1600 = vunpack.c.l.b16 %v1440
        %v1601 = vunpack.c.h.b16 %v1440
        %v1602 = vunpack.c.l.b16 %v1441
        %v1603 = vunpack.c.h.b16 %v1441
        %v1604 = vunpack.c.l.b16 %v1442
        %v1605 = vunpack.c.h.b16 %v1442
        %v1606 = vunpack.c.l.b16 %v1443
        %v1607 = vunpack.c.h.b16 %v1443
        %v1608 = vunpack.c.l.b16 %v1444
        %v1609 = vunpack.c.h.b16 %v1444
        %v1610 = vunpack.c.l.b16 %v1445
        %v1611 = vunpack.c.h.b16 %v1445
        %v1612 = vunpack.c.l.b16 %v1446
        %v1613 = vunpack.c.h.b16 %v1446
        %v1614 = vunpack.c.l.b16 %v1447
        %v1615 = vunpack.c.h.b16 %v1447
        %v1616 = vunpack.c.l.b16 %v1448
        %v1617 = vunpack.c.h.b16 %v1448
        %v1618 = vunpack.c.l.b16 %v1449
        %v1619 = vunpack.c.h.b16 %v1449
        %v1620 = vunpack.c.l.b16 %v1450
        %v1621 = vunpack.c.h.b16 %v1450
        %v1622 = vunpack.c.l.b16 %v1451
        %v1623 = vunpack.c.h.b16 %v1451
        %v1624 = vunpack.c.l.b16 %v1452
        %v1625 = vunpack.c.h.b16 %v1452
        %v1626 = vunpack.c.l.b16 %v1453
        %v1627 = vunpack.c.h.b16 %v1453
        %v1628 = vunpack.c.l.b16 %v1454
        %v1629 = vunpack.c.h.b16 %v1454
        %v1630 = vunpack.c.l.b16 %v1455
        %v1631 = vunpack.c.h.b16 %v1455
        %v1632 = vunpack.c.l.b16 %v1456
        %v1633 = vunpack.c.h.b16 %v1456
        %v1634 = vunpack.c.l.b16 %v1457
        %v1635 = vunpack.c.h.b16 %v1457
        %v1636 = vunpack.c.l.b16 %v1458
        %v1637 = vunpack.c.h.b16 %v1458
        %v1638 = vunpack.c.l.b16 %v1459
        %v1639 = vunpack.c.h.b16 %v1459
        %v1640 = vunpack.c.l.b16 %v1460
        %v1641 = vunpack.c.h.b16 %v1460
        %v1642 = vunpack.c.l.b16 %v1461
        %v1643 = vunpack.c.h.b16 %v1461
        %v1644 = vunpack.c.l.b16 %v1462
        %v1645 = vunpack.c.h.b16 %v1462
        %v1646 = vunpack.c.l.b16 %v1463
        %v1647 = vunpack.c.h.b16 %v1463
        %v1648 = vunpack.c.l.b16 %v1464
        %v1649 = vunpack.c.h.b16 %v1464
        %v1650 = vunpack.c.l.b16 %v1465
        %v1651 = vunpack.c.h.b16 %v1465
        %v1652 = vunpack.c.l.b16 %v1466
        %v1653 = vunpack.c.h.b16 %v1466
        %v1654 = vunpack.c.l.b16 %v1467
        %v1655 = vunpack.c.h.b16 %v1467
        %v1656 = vunpack.c.l.b16 %v1468
        %v1657 = vunpack.c.h.b16 %v1468
        %v1658 = vunpack.c.l.b16 %v1469
        %v1659 = vunpack.c.h.b16 %v1469
        %v1660 = vunpack.c.l.b16 %v1470
        %v1661 = vunpack.c.h.b16 %v1470
        %v1662 = vunpack.c.l.b16 %v1471
        %v1663 = vunpack.c.h.b16 %v1471
        %v1664 = vpack.c.b16 %v1538, %v1536
        %v1665 = vpack.c.b16 %v1539, %v1537
        %v1666 = vpack.c.b16 %v1542, %v1540
        %v1667 = vpack.c.b16 %v1543, %v1541
        %v1668 = vpack.c.b16 %v1546, %v1544
        %v1669 = vpack.c.b16 %v1547, %v1545
        %v1670 = vpack.c.b16 %v1550, %v1548
        %v1671 = vpack.c.b16 %v1551, %v1549
        %v1672 = vpack.c.b16 %v1554, %v1552
        %v1673 = vpack.c.b16 %v1555, %v1553
        %v1674 = vpack.c.b16 %v1558, %v1556
        %v1675 = vpack.c.b16 %v1559, %v1557
        %v1676 = vpack.c.b16 %v1562, %v1560
        %v1677 = vpack.c.b16 %v1563, %v1561
        %v1678 = vpack.c.b16 %v1566, %v1564
        %v1679 = vpack.c.b16 %v1567, %v1565
        %v1680 = vpack.c.b16 %v1570, %v1568
        %v1681 = vpack.c.b16 %v1571, %v1569
        %v1682 = vpack.c.b16 %v1574, %v1572
        %v1683 = vpack.c.b16 %v1575, %v1573
        %v1684 = vpack.c.b16 %v1578, %v1576
        %v1685 = vpack.c.b16 %v1579, %v1577
        %v1686 = vpack.c.b16 %v1582, %v1580
        %v1687 = vpack.c.b16 %v1583, %v1581
        %v1688 = vpack.c.b16 %v1586, %v1584
        %v1689 = vpack.c.b16 %v1587, %v1585
        %v1690 = vpack.c.b16 %v1590, %v1588
        %v1691 = vpack.c.b16 %v1591, %v1589
        %v1692 = vpack.c.b16 %v1594, %v1592
        %v1693 = vpack.c.b16 %v1595, %v1593
        %v1694 = vpack.c.b16 %v1598, %v1596
        %v1695 = vpack.c.b16 %v1599, %v1597
        %v1696 = vpack.c.b16 %v1602, %v1600
        %v1697 = vpack.c.b16 %v1603, %v1601
        %v1698 = vpack.c.b16 %v1606, %v1604
        %v1699 = vpack.c.b16 %v1607, %v1605
        %v1700 = vpack.c.b16 %v1610, %v1608
        %v1701 = vpack.c.b16 %v1611, %v1609
        %v1702 = vpack.c.b16 %v1614, %v1612
        %v1703 = vpack.c.b16 %v1615, %v1613
        %v1704 = vpack.c.b16 %v1618, %v1616
        %v1705 = vpack.c.b16 %v1619, %v1617
        %v1706 = vpack.c.b16 %v1622, %v1620
        %v1707 = vpack.c.b16 %v1623, %v1621
        %v1708 = vpack.c.b16 %v1626, %v1624
        %v1709 = vpack.c.b16 %v1627, %v1625
        %v1710 = vpack.c.b16 %v1630, %v1628
        %v1711 = vpack.c.b16 %v1631, %v1629
        %v1712 = vpack.c.b16 %v1634, %v1632
        %v1713 = vpack.c.b16 %v1635, %v1633
        %v1714 = vpack.c.b16 %v1638, %v1636
        %v1715 = vpack.c.b16 %v1639, %v1637
        %v1716 = vpack.c.b16 %v1642, %v1640
        %v1717 = vpack.c.b16 %v1643, %v1641
        %v1718 = vpack.c.b16 %v1646, %v1644
        %v1719 = vpack.c.b16 %v1647, %v1645
        %v1720 = vpack.c.b16 %v1650, %v1648
        %v1721 = vpack.c.b16 %v1651, %v1649
        %v1722 = vpack.c.b16 %v1654, %v1652
        %v1723 = vpack.c.b16 %v1655, %v1653
        %v1724 = vpack.c.b16 %v1658, %v1656
        %v1725 = vpack.c.b16 %v1659, %v1657
        %v1726 = vpack.c.b16 %v1662, %v1660
        %v1727 = vpack.c.b16 %v1663, %v1661
        %1792 = vmatprep.subr.bf16.mxu0 0
        %1793 = vmatpush1.bf16.msra.mxu0 %v357
        %1794 = vmatprep.subr.bf16.mxu0 0
        %1795 = vmatpush1.bf16.msra.mxu0 %v356
        %1796 = vmatprep.subr.bf16.mxu0 0
        %1797 = vmatpush1.bf16.msra.mxu0 %v355
        %1798 = vmatprep.subr.bf16.mxu0 0
        %1799 = vmatpush1.bf16.msra.mxu0 %v354
        %1800 = vmatprep.subr.bf16.mxu0 0
        %1801 = vmatpush1.bf16.msra.mxu0 %v353
        %1802 = vmatprep.subr.bf16.mxu0 0
        %1803 = vmatpush1.bf16.msra.mxu0 %v352
        %1804 = vmatprep.subr.bf16.mxu0 0
        %1805 = vmatpush1.bf16.msra.mxu0 %v351
        %1806 = vmatprep.subr.bf16.mxu0 0
        %1807 = vmatpush1.bf16.msra.mxu0 %v350
        %1808 = vmatprep.subr.bf16.mxu0 0
        %1809 = vmatpush2.bf16.msra.mxu0 %v365
        %1810 = vmatprep.subr.bf16.mxu0 0
        %1811 = vmatpush2.bf16.msra.mxu0 %v364
        %1812 = vmatprep.subr.bf16.mxu0 0
        %1813 = vmatpush2.bf16.msra.mxu0 %v363
        %1814 = vmatprep.subr.bf16.mxu0 0
        %1815 = vmatpush2.bf16.msra.mxu0 %v362
        %1816 = vmatprep.subr.bf16.mxu0 0
        %1817 = vmatpush2.bf16.msra.mxu0 %v361
        %1818 = vmatprep.subr.bf16.mxu0 0
        %1819 = vmatpush2.bf16.msra.mxu0 %v360
        %1820 = vmatprep.subr.bf16.mxu0 0
        %1821 = vmatpush2.bf16.msra.mxu0 %v359
        %1822 = vmatprep.subr.bf16.mxu0 0
        %1823 = vmatpush2.bf16.msra.mxu0 %v358
        %1824 = vmatprep.mubr.bf16.mxu0 %v1665
        %1825 = vmatmul.mubr.bf16.gmra.mxu0 %v1664
        %v1826 = vpop.f32.mrf.mxu0
        %v1827 = vadd.f32 0.0, %v1826
        %v1828 = vpop.f32.mrf.mxu0
        %v1829 = vpop.f32.mrf.mxu0
        %v1830 = vadd.f32 0.0, %v1829
        %v1831 = vpop.f32.mrf.mxu0
        %1832 = vmatprep.mubr.bf16.mxu0 %v1667
        %1833 = vmatmul.mubr.bf16.gmra.mxu0 %v1666
        %v1834 = vpop.f32.mrf.mxu0
        %v1835 = vadd.f32 0.0, %v1834
        %v1836 = vpop.f32.mrf.mxu0
        %v1837 = vpop.f32.mrf.mxu0
        %v1838 = vadd.f32 0.0, %v1837
        %v1839 = vpop.f32.mrf.mxu0
        %1840 = vmatprep.mubr.bf16.mxu0 %v1669
        %1841 = vmatmul.mubr.bf16.gmra.mxu0 %v1668
        %v1842 = vpop.f32.mrf.mxu0
        %v1843 = vadd.f32 0.0, %v1842
        %v1844 = vpop.f32.mrf.mxu0
        %v1845 = vpop.f32.mrf.mxu0
        %v1846 = vadd.f32 0.0, %v1845
        %v1847 = vpop.f32.mrf.mxu0
        %1848 = vmatprep.mubr.bf16.mxu0 %v1671
        %1849 = vmatmul.mubr.bf16.gmra.mxu0 %v1670
        %v1850 = vpop.f32.mrf.mxu0
        %v1851 = vadd.f32 0.0, %v1850
        %v1852 = vpop.f32.mrf.mxu0
        %v1853 = vpop.f32.mrf.mxu0
        %v1854 = vadd.f32 0.0, %v1853
        %v1855 = vpop.f32.mrf.mxu0
        %1856 = vmatprep.mubr.bf16.mxu0 %v1673
        %1857 = vmatmul.mubr.bf16.gmra.mxu0 %v1672
        %v1858 = vpop.f32.mrf.mxu0
        %v1859 = vadd.f32 0.0, %v1858
        %v1860 = vpop.f32.mrf.mxu0
        %v1861 = vpop.f32.mrf.mxu0
        %v1862 = vadd.f32 0.0, %v1861
        %v1863 = vpop.f32.mrf.mxu0
        %1864 = vmatprep.mubr.bf16.mxu0 %v1675
        %1865 = vmatmul.mubr.bf16.gmra.mxu0 %v1674
        %v1866 = vpop.f32.mrf.mxu0
        %v1867 = vadd.f32 0.0, %v1866
        %v1868 = vpop.f32.mrf.mxu0
        %v1869 = vpop.f32.mrf.mxu0
        %v1870 = vadd.f32 0.0, %v1869
        %v1871 = vpop.f32.mrf.mxu0
        %1872 = vmatprep.mubr.bf16.mxu0 %v1677
        %1873 = vmatmul.mubr.bf16.gmra.mxu0 %v1676
        %v1874 = vpop.f32.mrf.mxu0
        %v1875 = vadd.f32 0.0, %v1874
        %v1876 = vpop.f32.mrf.mxu0
        %v1877 = vpop.f32.mrf.mxu0
        %v1878 = vadd.f32 0.0, %v1877
        %v1879 = vpop.f32.mrf.mxu0
        %1880 = vmatprep.mubr.bf16.mxu0 %v1679
        %1881 = vmatmul.mubr.bf16.gmra.mxu0 %v1678
        %v1882 = vpop.f32.mrf.mxu0
        %v1883 = vadd.f32 0.0, %v1882
        %v1884 = vpop.f32.mrf.mxu0
        %v1885 = vpop.f32.mrf.mxu0
        %v1886 = vadd.f32 0.0, %v1885
        %v1887 = vpop.f32.mrf.mxu0
        %1888 = vmatprep.mubr.bf16.mxu0 %v1681
        %1889 = vmatmul.mubr.bf16.gmra.mxu0 %v1680
        %v1890 = vpop.f32.mrf.mxu0
        %v1891 = vadd.f32 0.0, %v1890
        %v1892 = vpop.f32.mrf.mxu0
        %v1893 = vpop.f32.mrf.mxu0
        %v1894 = vadd.f32 0.0, %v1893
        %v1895 = vpop.f32.mrf.mxu0
        %1896 = vmatprep.mubr.bf16.mxu0 %v1683
        %1897 = vmatmul.mubr.bf16.gmra.mxu0 %v1682
        %v1898 = vpop.f32.mrf.mxu0
        %v1899 = vadd.f32 0.0, %v1898
        %v1900 = vpop.f32.mrf.mxu0
        %v1901 = vpop.f32.mrf.mxu0
        %v1902 = vadd.f32 0.0, %v1901
        %v1903 = vpop.f32.mrf.mxu0
        %1904 = vmatprep.mubr.bf16.mxu0 %v1685
        %1905 = vmatmul.mubr.bf16.gmra.mxu0 %v1684
        %v1906 = vpop.f32.mrf.mxu0
        %v1907 = vadd.f32 0.0, %v1906
        %v1908 = vpop.f32.mrf.mxu0
        %v1909 = vpop.f32.mrf.mxu0
        %v1910 = vadd.f32 0.0, %v1909
        %v1911 = vpop.f32.mrf.mxu0
        %1912 = vmatprep.mubr.bf16.mxu0 %v1687
        %1913 = vmatmul.mubr.bf16.gmra.mxu0 %v1686
        %v1914 = vpop.f32.mrf.mxu0
        %v1915 = vadd.f32 0.0, %v1914
        %v1916 = vpop.f32.mrf.mxu0
        %v1917 = vpop.f32.mrf.mxu0
        %v1918 = vadd.f32 0.0, %v1917
        %v1919 = vpop.f32.mrf.mxu0
        %1920 = vmatprep.mubr.bf16.mxu0 %v1689
        %1921 = vmatmul.mubr.bf16.gmra.mxu0 %v1688
        %v1922 = vpop.f32.mrf.mxu0
        %v1923 = vadd.f32 0.0, %v1922
        %v1924 = vpop.f32.mrf.mxu0
        %v1925 = vpop.f32.mrf.mxu0
        %v1926 = vadd.f32 0.0, %v1925
        %v1927 = vpop.f32.mrf.mxu0
        %1928 = vmatprep.mubr.bf16.mxu0 %v1691
        %1929 = vmatmul.mubr.bf16.gmra.mxu0 %v1690
        %v1930 = vpop.f32.mrf.mxu0
        %v1931 = vadd.f32 0.0, %v1930
        %v1932 = vpop.f32.mrf.mxu0
        %v1933 = vpop.f32.mrf.mxu0
        %v1934 = vadd.f32 0.0, %v1933
        %v1935 = vpop.f32.mrf.mxu0
        %1936 = vmatprep.mubr.bf16.mxu0 %v1693
        %1937 = vmatmul.mubr.bf16.gmra.mxu0 %v1692
        %v1938 = vpop.f32.mrf.mxu0
        %v1939 = vadd.f32 0.0, %v1938
        %v1940 = vpop.f32.mrf.mxu0
        %v1941 = vpop.f32.mrf.mxu0
        %v1942 = vadd.f32 0.0, %v1941
        %v1943 = vpop.f32.mrf.mxu0
        %1944 = vmatprep.mubr.bf16.mxu0 %v1695
        %1945 = vmatmul.mubr.bf16.gmra.mxu0 %v1694
        %v1946 = vpop.f32.mrf.mxu0
        %v1947 = vadd.f32 0.0, %v1946
        %v1948 = vpop.f32.mrf.mxu0
        %v1949 = vpop.f32.mrf.mxu0
        %v1950 = vadd.f32 0.0, %v1949
        %v1951 = vpop.f32.mrf.mxu0
        %1952 = vmatprep.mubr.bf16.mxu0 %v1697
        %1953 = vmatmul.mubr.bf16.gmra.mxu0 %v1696
        %v1954 = vpop.f32.mrf.mxu0
        %v1955 = vadd.f32 0.0, %v1954
        %v1956 = vpop.f32.mrf.mxu0
        %v1957 = vpop.f32.mrf.mxu0
        %v1958 = vadd.f32 0.0, %v1957
        %v1959 = vpop.f32.mrf.mxu0
        %1960 = vmatprep.mubr.bf16.mxu0 %v1699
        %1961 = vmatmul.mubr.bf16.gmra.mxu0 %v1698
        %v1962 = vpop.f32.mrf.mxu0
        %v1963 = vadd.f32 0.0, %v1962
        %v1964 = vpop.f32.mrf.mxu0
        %v1965 = vpop.f32.mrf.mxu0
        %v1966 = vadd.f32 0.0, %v1965
        %v1967 = vpop.f32.mrf.mxu0
        %1968 = vmatprep.mubr.bf16.mxu0 %v1701
        %1969 = vmatmul.mubr.bf16.gmra.mxu0 %v1700
        %v1970 = vpop.f32.mrf.mxu0
        %v1971 = vadd.f32 0.0, %v1970
        %v1972 = vpop.f32.mrf.mxu0
        %v1973 = vpop.f32.mrf.mxu0
        %v1974 = vadd.f32 0.0, %v1973
        %v1975 = vpop.f32.mrf.mxu0
        %1976 = vmatprep.mubr.bf16.mxu0 %v1703
        %1977 = vmatmul.mubr.bf16.gmra.mxu0 %v1702
        %v1978 = vpop.f32.mrf.mxu0
        %v1979 = vadd.f32 0.0, %v1978
        %v1980 = vpop.f32.mrf.mxu0
        %v1981 = vpop.f32.mrf.mxu0
        %v1982 = vadd.f32 0.0, %v1981
        %v1983 = vpop.f32.mrf.mxu0
        %1984 = vmatprep.mubr.bf16.mxu0 %v1705
        %1985 = vmatmul.mubr.bf16.gmra.mxu0 %v1704
        %v1986 = vpop.f32.mrf.mxu0
        %v1987 = vadd.f32 0.0, %v1986
        %v1988 = vpop.f32.mrf.mxu0
        %v1989 = vpop.f32.mrf.mxu0
        %v1990 = vadd.f32 0.0, %v1989
        %v1991 = vpop.f32.mrf.mxu0
        %1992 = vmatprep.mubr.bf16.mxu0 %v1707
        %1993 = vmatmul.mubr.bf16.gmra.mxu0 %v1706
        %v1994 = vpop.f32.mrf.mxu0
        %v1995 = vadd.f32 0.0, %v1994
        %v1996 = vpop.f32.mrf.mxu0
        %v1997 = vpop.f32.mrf.mxu0
        %v1998 = vadd.f32 0.0, %v1997
        %v1999 = vpop.f32.mrf.mxu0
        %2000 = vmatprep.mubr.bf16.mxu0 %v1709
        %2001 = vmatmul.mubr.bf16.gmra.mxu0 %v1708
        %v2002 = vpop.f32.mrf.mxu0
        %v2003 = vadd.f32 0.0, %v2002
        %v2004 = vpop.f32.mrf.mxu0
        %v2005 = vpop.f32.mrf.mxu0
        %v2006 = vadd.f32 0.0, %v2005
        %v2007 = vpop.f32.mrf.mxu0
        %2008 = vmatprep.mubr.bf16.mxu0 %v1711
        %2009 = vmatmul.mubr.bf16.gmra.mxu0 %v1710
        %v2010 = vpop.f32.mrf.mxu0
        %v2011 = vadd.f32 0.0, %v2010
        %v2012 = vpop.f32.mrf.mxu0
        %v2013 = vpop.f32.mrf.mxu0
        %v2014 = vadd.f32 0.0, %v2013
        %v2015 = vpop.f32.mrf.mxu0
        %2016 = vmatprep.mubr.bf16.mxu0 %v1713
        %2017 = vmatmul.mubr.bf16.gmra.mxu0 %v1712
        %v2018 = vpop.f32.mrf.mxu0
        %v2019 = vadd.f32 0.0, %v2018
        %v2020 = vpop.f32.mrf.mxu0
        %v2021 = vpop.f32.mrf.mxu0
        %v2022 = vadd.f32 0.0, %v2021
        %v2023 = vpop.f32.mrf.mxu0
        %2024 = vmatprep.mubr.bf16.mxu0 %v1715
        %2025 = vmatmul.mubr.bf16.gmra.mxu0 %v1714
        %v2026 = vpop.f32.mrf.mxu0
        %v2027 = vadd.f32 0.0, %v2026
        %v2028 = vpop.f32.mrf.mxu0
        %v2029 = vpop.f32.mrf.mxu0
        %v2030 = vadd.f32 0.0, %v2029
        %v2031 = vpop.f32.mrf.mxu0
        %2032 = vmatprep.mubr.bf16.mxu0 %v1717
        %2033 = vmatmul.mubr.bf16.gmra.mxu0 %v1716
        %v2034 = vpop.f32.mrf.mxu0
        %v2035 = vadd.f32 0.0, %v2034
        %v2036 = vpop.f32.mrf.mxu0
        %v2037 = vpop.f32.mrf.mxu0
        %v2038 = vadd.f32 0.0, %v2037
        %v2039 = vpop.f32.mrf.mxu0
        %2040 = vmatprep.mubr.bf16.mxu0 %v1719
        %2041 = vmatmul.mubr.bf16.gmra.mxu0 %v1718
        %v2042 = vpop.f32.mrf.mxu0
        %v2043 = vadd.f32 0.0, %v2042
        %v2044 = vpop.f32.mrf.mxu0
        %v2045 = vpop.f32.mrf.mxu0
        %v2046 = vadd.f32 0.0, %v2045
        %v2047 = vpop.f32.mrf.mxu0
        %2048 = vmatprep.mubr.bf16.mxu0 %v1721
        %2049 = vmatmul.mubr.bf16.gmra.mxu0 %v1720
        %v2050 = vpop.f32.mrf.mxu0
        %v2051 = vadd.f32 0.0, %v2050
        %v2052 = vpop.f32.mrf.mxu0
        %v2053 = vpop.f32.mrf.mxu0
        %v2054 = vadd.f32 0.0, %v2053
        %v2055 = vpop.f32.mrf.mxu0
        %2056 = vmatprep.mubr.bf16.mxu0 %v1723
        %2057 = vmatmul.mubr.bf16.gmra.mxu0 %v1722
        %v2058 = vpop.f32.mrf.mxu0
        %v2059 = vadd.f32 0.0, %v2058
        %v2060 = vpop.f32.mrf.mxu0
        %v2061 = vpop.f32.mrf.mxu0
        %v2062 = vadd.f32 0.0, %v2061
        %v2063 = vpop.f32.mrf.mxu0
        %2064 = vmatprep.mubr.bf16.mxu0 %v1725
        %2065 = vmatmul.mubr.bf16.gmra.mxu0 %v1724
        %v2066 = vpop.f32.mrf.mxu0
        %v2067 = vadd.f32 0.0, %v2066
        %v2068 = vpop.f32.mrf.mxu0
        %v2069 = vpop.f32.mrf.mxu0
        %v2070 = vadd.f32 0.0, %v2069
        %v2071 = vpop.f32.mrf.mxu0
        %2072 = vmatprep.mubr.bf16.mxu0 %v1727
        %2073 = vmatmul.mubr.bf16.gmra.mxu0 %v1726
        %v2074 = vpop.f32.mrf.mxu0
        %v2075 = vadd.f32 0.0, %v2074
        %v2076 = vpop.f32.mrf.mxu0
        %v2077 = vpop.f32.mrf.mxu0
        %v2078 = vadd.f32 0.0, %v2077
        %v2079 = vpop.f32.mrf.mxu0
        %2080 = vdwg.mxu0
        %v2081 = vadd.f32 %v1154, %v1827
        %v2082 = vadd.f32 %v1157, %v1830
        %v2083 = vadd.f32 %v1162, %v1835
        %v2084 = vadd.f32 %v1165, %v1838
        %v2085 = vadd.f32 %v1170, %v1843
        %v2086 = vadd.f32 %v1173, %v1846
        %v2087 = vadd.f32 %v1178, %v1851
        %v2088 = vadd.f32 %v1181, %v1854
        %v2089 = vadd.f32 %v1186, %v1859
        %v2090 = vadd.f32 %v1189, %v1862
        %v2091 = vadd.f32 %v1194, %v1867
        %v2092 = vadd.f32 %v1197, %v1870
        %v2093 = vadd.f32 %v1202, %v1875
        %v2094 = vadd.f32 %v1205, %v1878
        %v2095 = vadd.f32 %v1210, %v1883
        %v2096 = vadd.f32 %v1213, %v1886
        %v2097 = vadd.f32 %v1218, %v1891
        %v2098 = vadd.f32 %v1221, %v1894
        %v2099 = vadd.f32 %v1226, %v1899
        %v2100 = vadd.f32 %v1229, %v1902
        %v2101 = vadd.f32 %v1234, %v1907
        %v2102 = vadd.f32 %v1237, %v1910
        %v2103 = vadd.f32 %v1242, %v1915
        %v2104 = vadd.f32 %v1245, %v1918
        %v2105 = vadd.f32 %v1250, %v1923
        %v2106 = vadd.f32 %v1253, %v1926
        %v2107 = vadd.f32 %v1258, %v1931
        %v2108 = vadd.f32 %v1261, %v1934
        %v2109 = vadd.f32 %v1266, %v1939
        %v2110 = vadd.f32 %v1269, %v1942
        %v2111 = vadd.f32 %v1274, %v1947
        %v2112 = vadd.f32 %v1277, %v1950
        %v2113 = vadd.f32 %v1282, %v1955
        %v2114 = vadd.f32 %v1285, %v1958
        %v2115 = vadd.f32 %v1290, %v1963
        %v2116 = vadd.f32 %v1293, %v1966
        %v2117 = vadd.f32 %v1298, %v1971
        %v2118 = vadd.f32 %v1301, %v1974
        %v2119 = vadd.f32 %v1306, %v1979
        %v2120 = vadd.f32 %v1309, %v1982
        %v2121 = vadd.f32 %v1314, %v1987
        %v2122 = vadd.f32 %v1317, %v1990
        %v2123 = vadd.f32 %v1322, %v1995
        %v2124 = vadd.f32 %v1325, %v1998
        %v2125 = vadd.f32 %v1330, %v2003
        %v2126 = vadd.f32 %v1333, %v2006
        %v2127 = vadd.f32 %v1338, %v2011
        %v2128 = vadd.f32 %v1341, %v2014
        %v2129 = vadd.f32 %v1346, %v2019
        %v2130 = vadd.f32 %v1349, %v2022
        %v2131 = vadd.f32 %v1354, %v2027
        %v2132 = vadd.f32 %v1357, %v2030
        %v2133 = vadd.f32 %v1362, %v2035
        %v2134 = vadd.f32 %v1365, %v2038
        %v2135 = vadd.f32 %v1370, %v2043
        %v2136 = vadd.f32 %v1373, %v2046
        %v2137 = vadd.f32 %v1378, %v2051
        %v2138 = vadd.f32 %v1381, %v2054
        %v2139 = vadd.f32 %v1386, %v2059
        %v2140 = vadd.f32 %v1389, %v2062
        %v2141 = vadd.f32 %v1394, %v2067
        %v2142 = vadd.f32 %v1397, %v2070
        %v2143 = vadd.f32 %v1402, %v2075
        %v2144 = vadd.f32 %v1405, %v2078
        %v2145 = vmul.f32 %v2081, %v2081
        %v2146 = vmul.f32 %v2082, %v2082
        %v2147 = vmul.f32 %v2083, %v2083
        %v2148 = vmul.f32 %v2084, %v2084
        %v2149 = vmul.f32 %v2085, %v2085
        %v2150 = vmul.f32 %v2086, %v2086
        %v2151 = vmul.f32 %v2087, %v2087
        %v2152 = vmul.f32 %v2088, %v2088
        %v2153 = vmul.f32 %v2089, %v2089
        %v2154 = vmul.f32 %v2090, %v2090
        %v2155 = vmul.f32 %v2091, %v2091
        %v2156 = vmul.f32 %v2092, %v2092
        %v2157 = vmul.f32 %v2093, %v2093
        %v2158 = vmul.f32 %v2094, %v2094
        %v2159 = vmul.f32 %v2095, %v2095
        %v2160 = vmul.f32 %v2096, %v2096
        %v2161 = vmul.f32 %v2097, %v2097
        %v2162 = vmul.f32 %v2098, %v2098
        %v2163 = vmul.f32 %v2099, %v2099
        %v2164 = vmul.f32 %v2100, %v2100
        %v2165 = vmul.f32 %v2101, %v2101
        %v2166 = vmul.f32 %v2102, %v2102
        %v2167 = vmul.f32 %v2103, %v2103
        %v2168 = vmul.f32 %v2104, %v2104
        %v2169 = vmul.f32 %v2105, %v2105
        %v2170 = vmul.f32 %v2106, %v2106
        %v2171 = vmul.f32 %v2107, %v2107
        %v2172 = vmul.f32 %v2108, %v2108
        %v2173 = vmul.f32 %v2109, %v2109
        %v2174 = vmul.f32 %v2110, %v2110
        %v2175 = vmul.f32 %v2111, %v2111
        %v2176 = vmul.f32 %v2112, %v2112
        %v2177 = vmul.f32 %v2113, %v2113
        %v2178 = vmul.f32 %v2114, %v2114
        %v2179 = vmul.f32 %v2115, %v2115
        %v2180 = vmul.f32 %v2116, %v2116
        %v2181 = vmul.f32 %v2117, %v2117
        %v2182 = vmul.f32 %v2118, %v2118
        %v2183 = vmul.f32 %v2119, %v2119
        %v2184 = vmul.f32 %v2120, %v2120
        %v2185 = vmul.f32 %v2121, %v2121
        %v2186 = vmul.f32 %v2122, %v2122
        %v2187 = vmul.f32 %v2123, %v2123
        %v2188 = vmul.f32 %v2124, %v2124
        %v2189 = vmul.f32 %v2125, %v2125
        %v2190 = vmul.f32 %v2126, %v2126
        %v2191 = vmul.f32 %v2127, %v2127
        %v2192 = vmul.f32 %v2128, %v2128
        %v2193 = vmul.f32 %v2129, %v2129
        %v2194 = vmul.f32 %v2130, %v2130
        %v2195 = vmul.f32 %v2131, %v2131
        %v2196 = vmul.f32 %v2132, %v2132
        %v2197 = vmul.f32 %v2133, %v2133
        %v2198 = vmul.f32 %v2134, %v2134
        %v2199 = vmul.f32 %v2135, %v2135
        %v2200 = vmul.f32 %v2136, %v2136
        %v2201 = vmul.f32 %v2137, %v2137
        %v2202 = vmul.f32 %v2138, %v2138
        %v2203 = vmul.f32 %v2139, %v2139
        %v2204 = vmul.f32 %v2140, %v2140
        %v2205 = vmul.f32 %v2141, %v2141
        %v2206 = vmul.f32 %v2142, %v2142
        %v2207 = vmul.f32 %v2143, %v2143
        %v2208 = vmul.f32 %v2144, %v2144
        %v2209 = vadd.f32 %v2145, %v2177
        %v2210 = vadd.f32 %v2146, %v2178
        %v2211 = vadd.f32 %v2147, %v2179
        %v2212 = vadd.f32 %v2148, %v2180
        %v2213 = vadd.f32 %v2149, %v2181
        %v2214 = vadd.f32 %v2150, %v2182
        %v2215 = vadd.f32 %v2151, %v2183
        %v2216 = vadd.f32 %v2152, %v2184
        %v2217 = vadd.f32 %v2153, %v2185
        %v2218 = vadd.f32 %v2154, %v2186
        %v2219 = vadd.f32 %v2155, %v2187
        %v2220 = vadd.f32 %v2156, %v2188
        %v2221 = vadd.f32 %v2157, %v2189
        %v2222 = vadd.f32 %v2158, %v2190
        %v2223 = vadd.f32 %v2159, %v2191
        %v2224 = vadd.f32 %v2160, %v2192
        %v2225 = vadd.f32 %v2161, %v2193
        %v2226 = vadd.f32 %v2162, %v2194
        %v2227 = vadd.f32 %v2163, %v2195
        %v2228 = vadd.f32 %v2164, %v2196
        %v2229 = vadd.f32 %v2165, %v2197
        %v2230 = vadd.f32 %v2166, %v2198
        %v2231 = vadd.f32 %v2167, %v2199
        %v2232 = vadd.f32 %v2168, %v2200
        %v2233 = vadd.f32 %v2169, %v2201
        %v2234 = vadd.f32 %v2170, %v2202
        %v2235 = vadd.f32 %v2171, %v2203
        %v2236 = vadd.f32 %v2172, %v2204
        %v2237 = vadd.f32 %v2173, %v2205
        %v2238 = vadd.f32 %v2174, %v2206
        %v2239 = vadd.f32 %v2175, %v2207
        %v2240 = vadd.f32 %v2176, %v2208
        %v2241 = vld [vmem:[#allocation8] sm:$0xff]
        %v2242 = vld [vmem:[#allocation8 + $0x8] sm:$0xff]
        %v2243 = vld [vmem:[#allocation8 + $0x10] sm:$0xff]
        %v2244 = vld [vmem:[#allocation8 + $0x18] sm:$0xff]
        %v2245 = vld [vmem:[#allocation8 + $0x20] sm:$0xff]
        %v2246 = vld [vmem:[#allocation8 + $0x28] sm:$0xff]
        %v2247 = vld [vmem:[#allocation8 + $0x30] sm:$0xff]
        %v2248 = vld [vmem:[#allocation8 + $0x38] sm:$0xff]
        %v2249 = vld [vmem:[#allocation8 + $0x40] sm:$0xff]
        %v2250 = vld [vmem:[#allocation8 + $0x48] sm:$0xff]
        %v2251 = vld [vmem:[#allocation8 + $0x50] sm:$0xff]
        %v2252 = vld [vmem:[#allocation8 + $0x58] sm:$0xff]
        %v2253 = vld [vmem:[#allocation8 + $0x60] sm:$0xff]
        %v2254 = vld [vmem:[#allocation8 + $0x68] sm:$0xff]
        %v2255 = vld [vmem:[#allocation8 + $0x70] sm:$0xff]
        %v2256 = vld [vmem:[#allocation8 + $0x78] sm:$0xff]
        %v2257 = vpack.c.bf16 %v2210, %v2209
        %v2258 = vpack.c.bf16 %v2212, %v2211
        %v2259 = vpack.c.bf16 %v2214, %v2213
        %v2260 = vpack.c.bf16 %v2216, %v2215
        %v2261 = vpack.c.bf16 %v2218, %v2217
        %v2262 = vpack.c.bf16 %v2220, %v2219
        %v2263 = vpack.c.bf16 %v2222, %v2221
        %v2264 = vpack.c.bf16 %v2224, %v2223
        %v2265 = vpack.c.bf16 %v2226, %v2225
        %v2266 = vpack.c.bf16 %v2228, %v2227
        %v2267 = vpack.c.bf16 %v2230, %v2229
        %v2268 = vpack.c.bf16 %v2232, %v2231
        %v2269 = vpack.c.bf16 %v2234, %v2233
        %v2270 = vpack.c.bf16 %v2236, %v2235
        %v2271 = vpack.c.bf16 %v2238, %v2237
        %v2272 = vpack.c.bf16 %v2240, %v2239
        %v2289 = vunpack.c.l.b16 %v2241
        %v2290 = vunpack.c.h.b16 %v2241
        %v2291 = vunpack.c.l.b16 %v2242
        %v2292 = vunpack.c.h.b16 %v2242
        %v2293 = vunpack.c.l.b16 %v2243
        %v2294 = vunpack.c.h.b16 %v2243
        %v2295 = vunpack.c.l.b16 %v2244
        %v2296 = vunpack.c.h.b16 %v2244
        %v2297 = vunpack.c.l.b16 %v2245
        %v2298 = vunpack.c.h.b16 %v2245
        %v2299 = vunpack.c.l.b16 %v2246
        %v2300 = vunpack.c.h.b16 %v2246
        %v2301 = vunpack.c.l.b16 %v2247
        %v2302 = vunpack.c.h.b16 %v2247
        %v2303 = vunpack.c.l.b16 %v2248
        %v2304 = vunpack.c.h.b16 %v2248
        %v2305 = vunpack.c.l.b16 %v2249
        %v2306 = vunpack.c.h.b16 %v2249
        %v2307 = vunpack.c.l.b16 %v2250
        %v2308 = vunpack.c.h.b16 %v2250
        %v2309 = vunpack.c.l.b16 %v2251
        %v2310 = vunpack.c.h.b16 %v2251
        %v2311 = vunpack.c.l.b16 %v2252
        %v2312 = vunpack.c.h.b16 %v2252
        %v2313 = vunpack.c.l.b16 %v2253
        %v2314 = vunpack.c.h.b16 %v2253
        %v2315 = vunpack.c.l.b16 %v2254
        %v2316 = vunpack.c.h.b16 %v2254
        %v2317 = vunpack.c.l.b16 %v2255
        %v2318 = vunpack.c.h.b16 %v2255
        %v2319 = vunpack.c.l.b16 %v2256
        %v2320 = vunpack.c.h.b16 %v2256
        %v2321 = vpack.c.b16 %v2291, %v2289
        %v2322 = vpack.c.b16 %v2292, %v2290
        %v2323 = vpack.c.b16 %v2295, %v2293
        %v2324 = vpack.c.b16 %v2296, %v2294
        %v2325 = vpack.c.b16 %v2299, %v2297
        %v2326 = vpack.c.b16 %v2300, %v2298
        %v2327 = vpack.c.b16 %v2303, %v2301
        %v2328 = vpack.c.b16 %v2304, %v2302
        %v2329 = vpack.c.b16 %v2307, %v2305
        %v2330 = vpack.c.b16 %v2308, %v2306
        %v2331 = vpack.c.b16 %v2311, %v2309
        %v2332 = vpack.c.b16 %v2312, %v2310
        %v2333 = vpack.c.b16 %v2315, %v2313
        %v2334 = vpack.c.b16 %v2316, %v2314
        %v2335 = vpack.c.b16 %v2319, %v2317
        %v2336 = vpack.c.b16 %v2320, %v2318
        %2353 = vmatprep.subr.bf16.mxu0 0
        %2354 = vmatpush1.bf16.msra.mxu0 %v2264
        %2355 = vmatprep.subr.bf16.mxu0 0
        %2356 = vmatpush1.bf16.msra.mxu0 %v2263
        %2357 = vmatprep.subr.bf16.mxu0 0
        %2358 = vmatpush1.bf16.msra.mxu0 %v2262
        %2359 = vmatprep.subr.bf16.mxu0 0
        %2360 = vmatpush1.bf16.msra.mxu0 %v2261
        %2361 = vmatprep.subr.bf16.mxu0 0
        %2362 = vmatpush1.bf16.msra.mxu0 %v2260
        %2363 = vmatprep.subr.bf16.mxu0 0
        %2364 = vmatpush1.bf16.msra.mxu0 %v2259
        %2365 = vmatprep.subr.bf16.mxu0 0
        %2366 = vmatpush1.bf16.msra.mxu0 %v2258
        %2367 = vmatprep.subr.bf16.mxu0 0
        %2368 = vmatpush1.bf16.msra.mxu0 %v2257
        %2369 = vmatprep.subr.bf16.mxu0 0
        %2370 = vmatpush2.bf16.msra.mxu0 %v2272
        %2371 = vmatprep.subr.bf16.mxu0 0
        %2372 = vmatpush2.bf16.msra.mxu0 %v2271
        %2373 = vmatprep.subr.bf16.mxu0 0
        %2374 = vmatpush2.bf16.msra.mxu0 %v2270
        %2375 = vmatprep.subr.bf16.mxu0 0
        %2376 = vmatpush2.bf16.msra.mxu0 %v2269
        %2377 = vmatprep.subr.bf16.mxu0 0
        %2378 = vmatpush2.bf16.msra.mxu0 %v2268
        %2379 = vmatprep.subr.bf16.mxu0 0
        %2380 = vmatpush2.bf16.msra.mxu0 %v2267
        %2381 = vmatprep.subr.bf16.mxu0 0
        %2382 = vmatpush2.bf16.msra.mxu0 %v2266
        %2383 = vmatprep.subr.bf16.mxu0 0
        %2384 = vmatpush2.bf16.msra.mxu0 %v2265
        %2385 = vmatprep.mubr.bf16.mxu0 %v2322
        %2386 = vmatmul.mubr.bf16.gmra.mxu0 %v2321
        %v2387 = vpop.f32.mrf.mxu0
        %v2388 = vadd.f32 0.0, %v2387
        %v2389 = vpop.f32.mrf.mxu0
        %v2390 = vpop.f32.mrf.mxu0
        %v2391 = vadd.f32 0.0, %v2390
        %v2392 = vpop.f32.mrf.mxu0
        %2393 = vmatprep.mubr.bf16.mxu0 %v2324
        %2394 = vmatmul.mubr.bf16.gmra.mxu0 %v2323
        %v2395 = vpop.f32.mrf.mxu0
        %v2396 = vadd.f32 0.0, %v2395
        %v2397 = vpop.f32.mrf.mxu0
        %v2398 = vpop.f32.mrf.mxu0
        %v2399 = vadd.f32 0.0, %v2398
        %v2400 = vpop.f32.mrf.mxu0
        %2401 = vmatprep.mubr.bf16.mxu0 %v2326
        %2402 = vmatmul.mubr.bf16.gmra.mxu0 %v2325
        %v2403 = vpop.f32.mrf.mxu0
        %v2404 = vadd.f32 0.0, %v2403
        %v2405 = vpop.f32.mrf.mxu0
        %v2406 = vpop.f32.mrf.mxu0
        %v2407 = vadd.f32 0.0, %v2406
        %v2408 = vpop.f32.mrf.mxu0
        %2409 = vmatprep.mubr.bf16.mxu0 %v2328
        %2410 = vmatmul.mubr.bf16.gmra.mxu0 %v2327
        %v2411 = vpop.f32.mrf.mxu0
        %v2412 = vadd.f32 0.0, %v2411
        %v2413 = vpop.f32.mrf.mxu0
        %v2414 = vpop.f32.mrf.mxu0
        %v2415 = vadd.f32 0.0, %v2414
        %v2416 = vpop.f32.mrf.mxu0
        %2417 = vmatprep.mubr.bf16.mxu0 %v2330
        %2418 = vmatmul.mubr.bf16.gmra.mxu0 %v2329
        %v2419 = vpop.f32.mrf.mxu0
        %v2420 = vadd.f32 0.0, %v2419
        %v2421 = vpop.f32.mrf.mxu0
        %v2422 = vpop.f32.mrf.mxu0
        %v2423 = vadd.f32 0.0, %v2422
        %v2424 = vpop.f32.mrf.mxu0
        %2425 = vmatprep.mubr.bf16.mxu0 %v2332
        %2426 = vmatmul.mubr.bf16.gmra.mxu0 %v2331
        %v2427 = vpop.f32.mrf.mxu0
        %v2428 = vadd.f32 0.0, %v2427
        %v2429 = vpop.f32.mrf.mxu0
        %v2430 = vpop.f32.mrf.mxu0
        %v2431 = vadd.f32 0.0, %v2430
        %v2432 = vpop.f32.mrf.mxu0
        %2433 = vmatprep.mubr.bf16.mxu0 %v2334
        %2434 = vmatmul.mubr.bf16.gmra.mxu0 %v2333
        %v2435 = vpop.f32.mrf.mxu0
        %v2436 = vadd.f32 0.0, %v2435
        %v2437 = vpop.f32.mrf.mxu0
        %v2438 = vpop.f32.mrf.mxu0
        %v2439 = vadd.f32 0.0, %v2438
        %v2440 = vpop.f32.mrf.mxu0
        %2441 = vmatprep.mubr.bf16.mxu0 %v2336
        %2442 = vmatmul.mubr.bf16.gmra.mxu0 %v2335
        %v2443 = vpop.f32.mrf.mxu0
        %v2444 = vadd.f32 0.0, %v2443
        %v2445 = vpop.f32.mrf.mxu0
        %v2446 = vpop.f32.mrf.mxu0
        %v2447 = vadd.f32 0.0, %v2446
        %v2448 = vpop.f32.mrf.mxu0
        %2449 = vdwg.mxu0
        %v2450 = vmax.f32 %v2388, 1e-10
        %v2451 = vmax.f32 %v2391, 1e-10
        %v2452 = vmax.f32 %v2396, 1e-10
        %v2453 = vmax.f32 %v2399, 1e-10
        %v2454 = vmax.f32 %v2404, 1e-10
        %v2455 = vmax.f32 %v2407, 1e-10
        %v2456 = vmax.f32 %v2412, 1e-10
        %v2457 = vmax.f32 %v2415, 1e-10
        %v2458 = vmax.f32 %v2420, 1e-10
        %v2459 = vmax.f32 %v2423, 1e-10
        %v2460 = vmax.f32 %v2428, 1e-10
        %v2461 = vmax.f32 %v2431, 1e-10
        %v2462 = vmax.f32 %v2436, 1e-10
        %v2463 = vmax.f32 %v2439, 1e-10
        %v2464 = vmax.f32 %v2444, 1e-10
        %v2465 = vmax.f32 %v2447, 1e-10
        %v2466 = vlog2.pop %v2450
        %v2467 = vmul.f32 %v2466, 0.6931472
        %v2468 = vlog2.pop %v2451
        %v2469 = vmul.f32 %v2468, 0.6931472
        %v2470 = vlog2.pop %v2452
        %v2471 = vmul.f32 %v2470, 0.6931472
        %v2472 = vlog2.pop %v2453
        %v2473 = vmul.f32 %v2472, 0.6931472
        %v2474 = vlog2.pop %v2454
        %v2475 = vmul.f32 %v2474, 0.6931472
        %v2476 = vlog2.pop %v2455
        %v2477 = vmul.f32 %v2476, 0.6931472
        %v2478 = vlog2.pop %v2456
        %v2479 = vmul.f32 %v2478, 0.6931472
        %v2480 = vlog2.pop %v2457
        %v2481 = vmul.f32 %v2480, 0.6931472
        %v2482 = vlog2.pop %v2458
        %v2483 = vmul.f32 %v2482, 0.6931472
        %v2484 = vlog2.pop %v2459
        %v2485 = vmul.f32 %v2484, 0.6931472
        %v2486 = vlog2.pop %v2460
        %v2487 = vmul.f32 %v2486, 0.6931472
        %v2488 = vlog2.pop %v2461
        %v2489 = vmul.f32 %v2488, 0.6931472
        %v2490 = vlog2.pop %v2462
        %v2491 = vmul.f32 %v2490, 0.6931472
        %v2492 = vlog2.pop %v2463
        %v2493 = vmul.f32 %v2492, 0.6931472
        %v2494 = vlog2.pop %v2464
        %v2495 = vmul.f32 %v2494, 0.6931472
        %v2496 = vlog2.pop %v2465
        %v2497 = vmul.f32 %v2496, 0.6931472
        %v2498 = vmul.f32 %v2467, 4.3429446
        %v2499 = vmul.f32 %v2469, 4.3429446
        %v2500 = vmul.f32 %v2471, 4.3429446
        %v2501 = vmul.f32 %v2473, 4.3429446
        %v2502 = vmul.f32 %v2475, 4.3429446
        %v2503 = vmul.f32 %v2477, 4.3429446
        %v2504 = vmul.f32 %v2479, 4.3429446
        %v2505 = vmul.f32 %v2481, 4.3429446
        %v2506 = vmul.f32 %v2483, 4.3429446
        %v2507 = vmul.f32 %v2485, 4.3429446
        %v2508 = vmul.f32 %v2487, 4.3429446
        %v2509 = vmul.f32 %v2489, 4.3429446
        %v2510 = vmul.f32 %v2491, 4.3429446
        %v2511 = vmul.f32 %v2493, 4.3429446
        %v2512 = vmul.f32 %v2495, 4.3429446
        %v2513 = vmul.f32 %v2497, 4.3429446
        %2514 = vst [vmem:[%s309] sm:$0xff] %v2498
        %2515 = vst [vmem:[%s309 + $0x8] sm:$0xff] %v2499
        %2516 = vst [vmem:[%s309 + $0x10] sm:$0xff] %v2500
        %2517 = vst [vmem:[%s309 + $0x18] sm:$0xff] %v2501
        %2518 = vst [vmem:[%s309 + $0x20] sm:$0xff] %v2502
        %2519 = vst [vmem:[%s309 + $0x28] sm:$0xff] %v2503
        %2520 = vst [vmem:[%s309 + $0x30] sm:$0xff] %v2504
        %2521 = vst [vmem:[%s309 + $0x38] sm:$0xff] %v2505
        %2522 = vst [vmem:[%s309 + $0x40] sm:$0xff] %v2506
        %2523 = vst [vmem:[%s309 + $0x48] sm:$0xff] %v2507
        %2524 = vst [vmem:[%s309 + $0x50] sm:$0xff] %v2508
        %2525 = vst [vmem:[%s309 + $0x58] sm:$0xff] %v2509
        %2526 = vst [vmem:[%s309 + $0x60] sm:$0xff] %v2510
        %2527 = vst [vmem:[%s309 + $0x68] sm:$0xff] %v2511
        %2528 = vst [vmem:[%s309 + $0x70] sm:$0xff] %v2512
        %2529 = vst [vmem:[%s309 + $0x78] sm:$0xff] %v2513
        %2530 = vmax.xlane.f32.xlu0 %v2498
        %v2531 = vpop.xlane.xlu0 %2530
        %2532 = vmax.xlane.f32.xlu0 %v2499
        %v2533 = vpop.xlane.xlu0 %2532
        %2534 = vmax.xlane.f32.xlu0 %v2500
        %v2535 = vpop.xlane.xlu0 %2534
        %2536 = vmax.xlane.f32.xlu0 %v2501
        %v2537 = vpop.xlane.xlu0 %2536
        %2538 = vmax.xlane.f32.xlu0 %v2502
        %v2539 = vpop.xlane.xlu0 %2538
        %2540 = vmax.xlane.f32.xlu0 %v2503
        %v2541 = vpop.xlane.xlu0 %2540
        %2542 = vmax.xlane.f32.xlu0 %v2504
        %v2543 = vpop.xlane.xlu0 %2542
        %2544 = vmax.xlane.f32.xlu0 %v2505
        %v2545 = vpop.xlane.xlu0 %2544
        %2546 = vmax.xlane.f32.xlu0 %v2506
        %v2547 = vpop.xlane.xlu0 %2546
        %2548 = vmax.xlane.f32.xlu0 %v2507
        %v2549 = vpop.xlane.xlu0 %2548
        %2550 = vmax.xlane.f32.xlu0 %v2508
        %v2551 = vpop.xlane.xlu0 %2550
        %2552 = vmax.xlane.f32.xlu0 %v2509
        %v2553 = vpop.xlane.xlu0 %2552
        %2554 = vmax.xlane.f32.xlu0 %v2510
        %v2555 = vpop.xlane.xlu0 %2554
        %2556 = vmax.xlane.f32.xlu0 %v2511
        %v2557 = vpop.xlane.xlu0 %2556
        %2558 = vmax.xlane.f32.xlu0 %v2512
        %v2559 = vpop.xlane.xlu0 %2558
        %2560 = vmax.xlane.f32.xlu0 %v2513
        %v2561 = vpop.xlane.xlu0 %2560
        %v2562 = vmax.f32 %v2531, %v2539
        %v2563 = vmax.f32 %v2533, %v2541
        %v2564 = vmax.f32 %v2535, %v2543
        %v2565 = vmax.f32 %v2537, %v2545
        %v2566 = vmax.f32 %v2562, %v2547
        %v2567 = vmax.f32 %v2563, %v2549
        %v2568 = vmax.f32 %v2564, %v2551
        %v2569 = vmax.f32 %v2565, %v2553
        %v2570 = vmax.f32 %v2566, %v2555
        %v2571 = vmax.f32 %v2567, %v2557
        %v2572 = vmax.f32 %v2568, %v2559
        %v2573 = vmax.f32 %v2569, %v2561
        %v2574 = vmax.f32 %v2570, %v2571
        %v2575 = vmax.f32 %v2572, %v2573
        %v2576 = vmax.f32 %v2574, %v2575
        %v2577 = vrot.slane %v2576, 4
        %v2578 = vmax.f32 %v2576, %v2577
        %v2579 = vrot.slane %v2578, 2
        %v2580 = vmax.f32 %v2578, %v2579
        %v2581 = vrot.slane %v2580, 1
        %v2582 = vmax.f32 %v2580, %v2581
        %2583 = vst [vmem:[%s316] sm:$0xff] %v2582
        %s2584 = sand.u32 %s141, 1
        %s2585 = scalar_lea.sflag [#allocation4], %s2584
        %s2586 = sand.u32 %s141, 1
        %s2587 = smul.addr %s2586, 128
        %s2588 = scalar_lea.vmem [#allocation10], %s2587
        %s2589 = sand.u32 %s169, 1
        %s2590 = scalar_lea.sflag [#allocation12], %s2589
        %s2591 = sand.u32 %s169, 1
        %s2592 = smul.addr %s2591, 8
        %s2593 = scalar_lea.vmem [#allocation11], %s2592
        // Predicated region
        $region53: #{tpu_custom_call.1} parent=35 // pred_check
          %p2594 = pneg %p151
        $region54: #{tpu_custom_call.1} parent=35 // pred_check_branch
          %2596 = sbr.rel (%p2594) target = $region56
        $region55: #{tpu_custom_call.1} parent=35 // pred_region
          %s2598 = ssub.s32 2048, 2048
          %2599 = vsyncadd %s2585, %s2598
          %s2600 = smul.addr %s32, 16
          %s2601 = sadd.s32 %s33, %s2600
          %s2602 = smul.addr %s2601, 128
          %s2603 = scalar_lea.hbm %s4, %s2602
          %s2604 = sshll.u32 %s2588, 4
          %s2605 = int_to_ptr.vmem [resolvable:$true] %s2604
          %2610 = dma.vmem_to_hbm [thread:$0]  %s2605, 2048, %s2603, %s2585, 128, 128, 8
        $region56: #{tpu_custom_call.1} parent=35 // pred_fallthru
          _
        // Predicated region
        $region57: #{tpu_custom_call.1} parent=35 // pred_check
          %p2611 = pneg %p179
        $region58: #{tpu_custom_call.1} parent=35 // pred_check_branch
          %2613 = sbr.rel (%p2611) target = $region60
        $region59: #{tpu_custom_call.1} parent=35 // pred_region
          %s2615 = ssub.s32 128, 128
          %2616 = vsyncadd %s2590, %s2615
          %s2617 = sadd.s32 %s33, %s32
          %s2618 = smul.addr %s2617, 128
          %s2619 = scalar_lea.hbm %s5, %s2618
          %s2621 = sshll.u32 %s2593, 4
          %s2622 = int_to_ptr.vmem [resolvable:$true] %s2621
          %2624 = dma.vmem_to_hbm [thread:$0]  %s2622, 128, %s2619, %s2590
        $region60: #{tpu_custom_call.1} parent=35 // pred_fallthru
          _
      $region36: #{tpu_custom_call.1} parent=5 // pred_fallthru
        _
      %p2625 = scmp.le.s32.totalorder 2, %s23
      // Predicated region
      $region61: #{tpu_custom_call.1} parent=5 // pred_check
        %p2626 = pneg %p2625
      $region62: #{tpu_custom_call.1} parent=5 // pred_check_branch
        %2628 = sbr.rel (%p2626) target = $region64
      $region63: #{tpu_custom_call.1} parent=5 // pred_region
        %s2629 = ssub.s32 %s23, 2
        // Predicated region
        $region65: #{tpu_custom_call.1} parent=63 // pred_check
          %p2630 = pneg %p157
        $region66: #{tpu_custom_call.1} parent=63 // pred_check_branch
          %2632 = sbr.rel (%p2630) target = $region68
        $region67: #{tpu_custom_call.1} parent=63 // pred_region
          %s2633 = sand.u32 %s142, 1
          %s2634 = scalar_lea.sflag [#allocation4], %s2633
          %s2635 = sand.u32 %s142, 1
          %s2636 = smul.addr %s2635, 128
          %s2637 = scalar_lea.vmem [#allocation10], %s2636
          %2638 = dma.done %s2634, 2048
        $region68: #{tpu_custom_call.1} parent=63 // pred_fallthru
          _
        // Predicated region
        $region69: #{tpu_custom_call.1} parent=63 // pred_check
          %p2639 = pneg %p185
        $region70: #{tpu_custom_call.1} parent=63 // pred_check_branch
          %2641 = sbr.rel (%p2639) target = $region72
        $region71: #{tpu_custom_call.1} parent=63 // pred_region
          %s2642 = sand.u32 %s170, 1
          %s2643 = scalar_lea.sflag [#allocation12], %s2642
          %s2644 = sand.u32 %s170, 1
          %s2645 = smul.addr %s2644, 8
          %s2646 = scalar_lea.vmem [#allocation11], %s2645
          %2647 = dma.done %s2643, 128
        $region72: #{tpu_custom_call.1} parent=63 // pred_fallthru
          _
      $region64: #{tpu_custom_call.1} parent=5 // pred_fallthru
        _
    $region6: #{tpu_custom_call.1} parent=1 // loop_footer
      %s27 = sadd.s32 1, %s23
    $region7: #{tpu_custom_call.1} parent=1 // loop_footer_branch
      %22 = sbr.rel target = $region3
    $region8: #{tpu_custom_call.1} parent=1 // loop_exit
      _
    %2648 = vsyncpa [#allocation3], 1
    %s2649 = scalar_lea.sflag [#allocation3], 1
    %2650 = vsyncpa %s2649, 1
    %2651 = vsyncpa [#allocation6], 1
    %2652 = vsyncpa [#allocation9], 1
    %2653 = vsyncpa [#allocation4], 1
    %s2654 = scalar_lea.sflag [#allocation4], 1
    %2655 = vsyncpa %s2654, 1
    %2656 = vsyncpa [#allocation12], 1
    %s2657 = scalar_lea.sflag [#allocation12], 1
    %2658 = vsyncpa %s2657, 1

</llo_original>
